<compile_context>
chip_gen: v7x
topology: tpu7x:2x2x1
jax: 0.10.0
libtpu: 0.0.40
codegen_flags: <defaults>
</compile_context>

<pallas_src>
import functools

import jax
import jax.numpy as jnp
from jax.experimental import pallas as pl
from jax.experimental.pallas import tpu as pltpu


_INV_SQRT2 = 0.7071067811865476
_LN_EPS = 1e-5


# ----------------------------------------------------------------------------
# shared math helpers (used both in-kernel and by the pure-JAX reference)
# ----------------------------------------------------------------------------
def _gelu(x):
    # exact (erf) GELU, matching torch.nn.GELU() default
    return 0.5 * x * (1.0 + jax.lax.erf(x * _INV_SQRT2))


def _layernorm(x, g, b):
    mean = jnp.mean(x, axis=-1, keepdims=True)
    var = jnp.mean(jnp.square(x - mean), axis=-1, keepdims=True)
    return (x - mean) * jax.lax.rsqrt(var + _LN_EPS) * g + b


def _bmm(a, w_bf16):
    # bf16 MXU matmul with f32 accumulation; weights are pre-cast to bf16.
    return jnp.dot(a.astype(jnp.bfloat16), w_bf16,
                   preferred_element_type=jnp.float32)


def _slice_ax(x, axis, a, b):
    idx = [slice(None)] * x.ndim
    idx[axis] = slice(a, b)
    return x[tuple(idx)]


def _rolled_half(y, step, axis, half):
    """Half `half` (0 or 1) of torch.roll(y, step, axis), via static slices.

    Equals roll(y, step, axis)[..., half*n2:(half+1)*n2, ...] with at most
    one concatenate (often none).
    """
    n = y.shape[axis]
    n2 = n // 2
    lo = (half * n2 - step) % n
    if lo + n2 <= n:
        return _slice_ax(y, axis, lo, lo + n2)
    return jnp.concatenate(
        [_slice_ax(y, axis, lo, n), _slice_ax(y, axis, 0, lo + n2 - n)],
        axis=axis)


def _unroll_merge(o0, o1, step, axis):
    """roll(concat([o0, o1], axis), -step, axis) as a single concatenate."""
    n2 = o0.shape[axis]
    n = 2 * n2
    s = step % n
    if s == 0:
        return jnp.concatenate([o0, o1], axis=axis)

    def pieces(a, b):  # pieces of concat([o0, o1])[a:b] along `axis`
        out = []
        if min(b, n2) > a:
            out.append(_slice_ax(o0, axis, a, min(b, n2)))
        if b > max(a, n2):
            out.append(_slice_ax(o1, axis, max(a, n2) - n2, b - n2))
        return out

    parts = pieces(s, n) + pieces(0, s)
    return parts[0] if len(parts) == 1 else jnp.concatenate(parts, axis=axis)


# ----------------------------------------------------------------------------
# the single fused kernel: patch-embed -> num_blocks HireMLPBlocks -> head
# ----------------------------------------------------------------------------
_NUM_BIAS_ROWS = 13  # ln1_g, ln1_b, h_b1, h_b2a, h_b2b, w_b1, w_b2a, w_b2b,
                     # c_b, ln2_g, ln2_b, mlp_b1, mlp_b2


def _hiremlp_kernel(patch_ref, we_ref, be_ref,
                    w1_ref, w2_ref, wcm_ref, wm2_ref, bias_ref,
                    whead_ref, bhead_ref,
                    out_ref, feat_ref,
                    *, Bblk, W, H, C, E, step, num_blocks):
    l = pl.program_id(1)                 # block index (inner, "arbitrary")
    Ch = C // 2
    Hg, Wg = H // 2, W // 2
    M = Bblk * W * H

    # ---- patch embedding: run once per batch tile (first block step) -------
    @pl.when(l == 0)
    def _():
        feat_ref[...] = _bmm(patch_ref[...], we_ref[...]) + be_ref[...]

    x = feat_ref[...]                    # (M, C) f32 residual stream
    bz = bias_ref[...]                   # (13, BW) f32 bias / LN slab

    # ---- LayerNorm 1 --------------------------------------------------------
    y = _layernorm(x, bz[0:1, :C], bz[1:2, :C])
    y4 = y.reshape(Bblk, W, H, C)

    # ---- per-block bf16 weight slabs ----------------------------------------
    w1 = w1_ref[...]                     # (2C, C)     [fc_h_w1 | fc_w_w1]
    w2 = w2_ref[...]                     # (C/2, 4C)   [h2_0|h2_1|w2_0|w2_1]
    wcm = wcm_ref[...]                   # (C, C+EC)   [fc_c_w | mlp_w1]
    wm2 = wm2_ref[...]                   # (EC, C)

    # ---- h branch: cross-region roll along H + inner-region MLP ------------
    a0 = _rolled_half(y4, step, 2, 0).reshape(-1, C)
    a1 = _rolled_half(y4, step, 2, 1).reshape(-1, C)
    t = _gelu(_bmm(a0, w1[:C, :Ch]) + _bmm(a1, w1[C:, :Ch]) + bz[2:3, :Ch])
    o0 = (_bmm(t, w2[:, 0 * C:1 * C]) + bz[3:4, :C]).reshape(Bblk, W, Hg, C)
    o1 = (_bmm(t, w2[:, 1 * C:2 * C]) + bz[4:5, :C]).reshape(Bblk, W, Hg, C)
    xh = _unroll_merge(o0, o1, step, axis=2)

    # ---- w branch: cross-region roll along W + inner-region MLP ------------
    a0 = _rolled_half(y4, step, 1, 0).reshape(-1, C)
    a1 = _rolled_half(y4, step, 1, 1).reshape(-1, C)
    t = _gelu(_bmm(a0, w1[:C, Ch:]) + _bmm(a1, w1[C:, Ch:]) + bz[5:6, :Ch])
    o0 = (_bmm(t, w2[:, 2 * C:3 * C]) + bz[6:7, :C]).reshape(Bblk, Wg, H, C)
    o1 = (_bmm(t, w2[:, 3 * C:4 * C]) + bz[7:8, :C]).reshape(Bblk, Wg, H, C)
    xw = _unroll_merge(o0, o1, step, axis=1)

    # ---- c branch ------------------------------------------------------------
    xc = _bmm(y, wcm[:, :C]) + bz[8:9, :C]

    x = x + xh.reshape(M, C) + xw.reshape(M, C) + xc          # residual 1

    # ---- LayerNorm 2 + expansion MLP + residual 2 ----------------------------
    z = _layernorm(x, bz[9:10, :C], bz[10:11, :C])
    z = _gelu(_bmm(z, wcm[:, C:]) + bz[11:12, :E * C])
    z = _bmm(z, wm2) + bz[12:13, :C]
    x = x + z
    feat_ref[...] = x

    # ---- mean-pool + classifier head after the last block --------------------
    @pl.when(l == num_blocks - 1)
    def _():
        pooled = jnp.mean(x.reshape(Bblk, W * H, C), axis=1)   # (Bblk, C)
        logits = _bmm(pooled, whead_ref[...]) + bhead_ref[...]
        out_ref[...] = logits[:, None, :].astype(out_ref.dtype)


# ----------------------------------------------------------------------------
# host-side weight packing (per-block slabs stacked over a leading block axis)
# ----------------------------------------------------------------------------
def _pack_block_params(blocks, C, E):
    BW = max(C, E * C, C // 2)
    w1s, w2s, wcms, wm2s, biases = [], [], [], [], []

    def row(v):
        v = v.reshape(-1).astype(jnp.float32)
        return jnp.pad(v, (0, BW - v.shape[0]))

    for p in blocks:
        w1s.append(jnp.concatenate([p["fc_h_w1"], p["fc_w_w1"]], axis=1))
        w2s.append(jnp.concatenate([p["fc_h_w2"], p["fc_w_w2"]], axis=1))
        wcms.append(jnp.concatenate([p["fc_c_w"], p["mlp_w1"]], axis=1))
        wm2s.append(p["mlp_w2"])
        biases.append(jnp.stack([
            row(p["ln1_g"]), row(p["ln1_b"]),
            row(p["fc_h_b1"]), row(p["fc_h_b2"][:C]), row(p["fc_h_b2"][C:]),
            row(p["fc_w_b1"]), row(p["fc_w_b2"][:C]), row(p["fc_w_b2"][C:]),
            row(p["fc_c_b"]), row(p["ln2_g"]), row(p["ln2_b"]),
            row(p["mlp_b1"]), row(p["mlp_b2"]),
        ]))

    bf = lambda xs: jnp.stack(xs).astype(jnp.bfloat16)
    return bf(w1s), bf(w2s), bf(wcms), bf(wm2s), jnp.stack(biases)


# ----------------------------------------------------------------------------
# wrapper: one pallas_call for the whole network
# ----------------------------------------------------------------------------
def hire_mlp_forward(x, params, *, patch, cross_region_step=1):
    B, Cin, Himg, Wimg = x.shape
    C = params["conv_w"].shape[0]
    E = params["blocks"][0]["mlp_w1"].shape[1] // C
    L = len(params["blocks"])
    NC = params["head_w"].shape[1]
    nH, nW = Himg // patch, Wimg // patch
    Wd, Hd = nH, nW                       # 'b c w h -> b w h c': w=nH, h=nW
    Ke = Cin * patch * patch

    # im2col of the strided conv (pure layout plumbing, done by XLA once)
    patches = (x.reshape(B, Cin, nH, patch, nW, patch)
               .transpose(0, 2, 4, 1, 3, 5)
               .reshape(B * nH * nW, Ke))

    we = params["conv_w"].reshape(C, Ke).T.astype(jnp.bfloat16)
    be = params["conv_b"].reshape(1, C).astype(jnp.float32)
    w1, w2, wcm, wm2, bias = _pack_block_params(params["blocks"], C, E)
    whead = params["head_w"].astype(jnp.bfloat16)
    bhead = params["head_b"].reshape(1, NC).astype(jnp.float32)

    # >= 2-way "parallel" batch axis when possible (keeps both v7x TCs busy).
    if B >= 2 and B % 2 == 0 and ((B // 2) * Wd * Hd) % 8 == 0:
        Bblk = B // 2
    else:
        Bblk = B
    nbt = B // Bblk
    M = Bblk * Wd * Hd

    kernel = functools.partial(
        _hiremlp_kernel, Bblk=Bblk, W=Wd, H=Hd, C=C, E=E,
        step=cross_region_step, num_blocks=L)

    def resident(a):                       # same block every grid step
        zeros = (0,) * a.ndim
        return pl.BlockSpec(tuple(a.shape), lambda b, l: zeros)

    def per_block(a):                      # indexed by the block grid axis
        shape = (None,) + tuple(a.shape[1:])
        zeros = (0,) * (a.ndim - 1)
        return pl.BlockSpec(shape, lambda b, l: (l,) + zeros)

    logits = pl.pallas_call(
        kernel,
        out_shape=jax.ShapeDtypeStruct((B, 1, NC), jnp.float32),
        grid=(nbt, L),
        in_specs=[
            pl.BlockSpec((M, Ke), lambda b, l: (b, 0)),   # im2col patches
            resident(we), resident(be),
            per_block(w1), per_block(w2), per_block(wcm), per_block(wm2),
            per_block(bias),
            resident(whead), resident(bhead),
        ],
        out_specs=pl.BlockSpec((Bblk, 1, NC), lambda b, l: (b, 0, 0)),
        scratch_shapes=[pltpu.VMEM((M, C), jnp.float32)],  # block-to-block carrier
        compiler_params=pltpu.CompilerParams(
            dimension_semantics=("parallel", "arbitrary")),
    )(patches, we, be, w1, w2, wcm, wm2, bias, whead, bhead)
    return logits.reshape(B, NC)


# ----------------------------------------------------------------------------
# pure-JAX reference (mirrors the torch module; same bf16/f32 precision)
# ----------------------------------------------------------------------------
def _reference_forward(x, params, *, patch, cross_region_step=1):
    B, Cin, Himg, Wimg = x.shape
    C = params["conv_w"].shape[0]
    nH, nW = Himg // patch, Wimg // patch

    def dot(a, w):
        return jnp.dot(a.astype(jnp.bfloat16), w.astype(jnp.bfloat16),
                       preferred_element_type=jnp.float32)

    pat = (x.reshape(B, Cin, nH, patch, nW, patch)
           .transpose(0, 2, 4, 1, 3, 5).reshape(B, nH, nW, -1))
    we = params["conv_w"].reshape(C, -1).T
    feat = dot(pat, we) + params["conv_b"]               # (B, W, H, C)

    h = w = 2
    step = cross_region_step
    for p in params["blocks"]:
        Wd, Hd = feat.shape[1], feat.shape[2]
        y = _layernorm(feat, p["ln1_g"], p["ln1_b"])
        # h branch
        r = jnp.roll(y, step, axis=2)
        g = Hd // h
        xh = (r.reshape(B, Wd, h, g, C).transpose(0, 1, 3, 2, 4)
              .reshape(B, Wd, g, h * C))
        xh = _gelu(dot(xh, p["fc_h_w1"]) + p["fc_h_b1"])
        xh = dot(xh, p["fc_h_w2"]) + p["fc_h_b2"]
        xh = (xh.reshape(B, Wd, g, h, C).transpose(0, 1, 3, 2, 4)
              .reshape(B, Wd, Hd, C))
        xh = jnp.roll(xh, -step, axis=2)
        # w branch
        r = jnp.roll(y, step, axis=1)
        gw = Wd // w
        xw = (r.reshape(B, w, gw, Hd, C).transpose(0, 2, 3, 1, 4)
              .reshape(B, gw, Hd, w * C))
        xw = _gelu(dot(xw, p["fc_w_w1"]) + p["fc_w_b1"])
        xw = dot(xw, p["fc_w_w2"]) + p["fc_w_b2"]
        xw = (xw.reshape(B, gw, Hd, w, C).transpose(0, 3, 1, 2, 4)
              .reshape(B, Wd, Hd, C))
        xw = jnp.roll(xw, -step, axis=1)
        # c branch
        xc = dot(y, p["fc_c_w"]) + p["fc_c_b"]
        feat = feat + xh + xw + xc
        z = _layernorm(feat, p["ln2_g"], p["ln2_b"])
        z = _gelu(dot(z, p["mlp_w1"]) + p["mlp_b1"])
        z = dot(z, p["mlp_w2"]) + p["mlp_b2"]
        feat = feat + z

    pooled = feat.mean(axis=(1, 2))
    return dot(pooled, params["head_w"]) + params["head_b"]


# ----------------------------------------------------------------------------
# deterministic parameter init (synthetic; shapes follow the torch module)
# ----------------------------------------------------------------------------
def init_params(key, in_c, hidden_dim, expansion, num_blocks, num_classes, patch):
    keys = jax.random.split(key, 4 + num_blocks)
    p = {}

    # Conv2d(in_c, hidden, kernel=patch, stride=patch), kaiming-normal (fan_out)
    fan_out = hidden_dim * patch * patch
    p["conv_w"] = jax.random.normal(keys[0], (hidden_dim, in_c, patch, patch),
                                    jnp.float32) * jnp.sqrt(2.0 / fan_out)
    p["conv_b"] = jnp.zeros((hidden_dim,), jnp.float32)

    def lin(k, din, dout):   # stored as (in, out); torch Linear is x @ W.T
        return jax.random.normal(k, (din, dout), jnp.float32) * 0.02

    blocks = []
    for i in range(num_blocks):
        bk = jax.random.split(keys[4 + i], 8)
        h = w = 2
        blocks.append({
            "ln1_g": jnp.ones((hidden_dim,), jnp.float32),
            "ln1_b": jnp.zeros((hidden_dim,), jnp.float32),
            "fc_h_w1": lin(bk[0], h * hidden_dim, hidden_dim // 2),
            "fc_h_b1": jnp.zeros((hidden_dim // 2,), jnp.float32),
            "fc_h_w2": lin(bk[1], hidden_dim // 2, h * hidden_dim),
            "fc_h_b2": jnp.zeros((h * hidden_dim,), jnp.float32),
            "fc_w_w1": lin(bk[2], w * hidden_dim, hidden_dim // 2),
            "fc_w_b1": jnp.zeros((hidden_dim // 2,), jnp.float32),
            "fc_w_w2": lin(bk[3], hidden_dim // 2, w * hidden_dim),
            "fc_w_b2": jnp.zeros((w * hidden_dim,), jnp.float32),
            "fc_c_w": lin(bk[4], hidden_dim, hidden_dim),
            "fc_c_b": jnp.zeros((hidden_dim,), jnp.float32),
            "ln2_g": jnp.ones((hidden_dim,), jnp.float32),
            "ln2_b": jnp.zeros((hidden_dim,), jnp.float32),
            "mlp_w1": lin(bk[5], hidden_dim, hidden_dim * expansion),
            "mlp_b1": jnp.zeros((hidden_dim * expansion,), jnp.float32),
            "mlp_w2": lin(bk[6], hidden_dim * expansion, hidden_dim),
            "mlp_b2": jnp.zeros((hidden_dim,), jnp.float32),
        })
    p["blocks"] = blocks

    p["head_w"] = lin(keys[1], hidden_dim, num_classes)
    p["head_b"] = jnp.zeros((num_classes,), jnp.float32)
    return p


# ----------------------------------------------------------------------------
if __name__ == "__main__":
    # HireMLP(patch_size=(4,4), image_size=(16,16), in_c=4, hidden_dim=32,
    #         expansion_factor=2, num_blocks=2, num_classes=10)
    B, in_c, img = 2, 4, 16
    patch, hidden_dim, expansion, num_blocks, num_classes = 4, 32, 2, 2, 10

    root = jax.random.PRNGKey(0)
    kx, kp = jax.random.split(root)
    x = jax.random.normal(kx, (B, in_c, img, img), jnp.float32)  # NCHW input
    params = init_params(kp, in_c, hidden_dim, expansion, num_blocks,
                         num_classes, patch)

    fwd = jax.jit(functools.partial(hire_mlp_forward, patch=patch))
    out = jax.block_until_ready(fwd(x, params))

    ref_fn = jax.jit(functools.partial(_reference_forward, patch=patch))
    ref = jax.block_until_ready(ref_fn(x, params))

    assert out.shape == (B, num_classes), out.shape
    assert bool(jnp.all(jnp.isfinite(out)))
    assert bool(jnp.allclose(out, ref, rtol=2e-2, atol=2e-3)), \
        float(jnp.max(jnp.abs(out - ref)))
    print("KERNEL_OK")
</pallas_src>

<mosaic_0001>
module attributes {stable_mosaic.version = 11 : i64} {
  func.func @_hiremlp_kernel(%arg0: i32, %arg1: i32, %arg2: memref<16x64xf32, #tpu.memory_space<vmem>>, %arg3: memref<64x32xbf16, #tpu.memory_space<vmem>>, %arg4: memref<1x32xf32, #tpu.memory_space<vmem>>, %arg5: memref<1x64x32xbf16, #tpu.memory_space<vmem>>, %arg6: memref<1x16x128xbf16, #tpu.memory_space<vmem>>, %arg7: memref<1x32x96xbf16, #tpu.memory_space<vmem>>, %arg8: memref<1x64x32xbf16, #tpu.memory_space<vmem>>, %arg9: memref<1x13x64xf32, #tpu.memory_space<vmem>>, %arg10: memref<32x10xbf16, #tpu.memory_space<vmem>>, %arg11: memref<1x10xf32, #tpu.memory_space<vmem>>, %arg12: memref<1x1x10xf32, #tpu.memory_space<vmem>>, %arg13: memref<16x32xf32, #tpu.memory_space<vmem>>) attributes {dimension_semantics = [#tpu.dimension_semantics<parallel>, #tpu.dimension_semantics<arbitrary>], iteration_bounds = array<i64: 2, 2>, scalar_prefetch = 0 : i64, scratch_operands = 1 : i64, tpu.core_type = #tpu.core_type<tc>, window_params = [{transform_indices = @transform_0, window_bounds = array<i64: 16, 64>}, {pipeline_mode = #tpu.pipeline_mode<synchronous>, transform_indices = @transform_1, window_bounds = array<i64: 64, 32>}, {pipeline_mode = #tpu.pipeline_mode<synchronous>, transform_indices = @transform_2, window_bounds = array<i64: 1, 32>}, {transform_indices = @transform_3, window_bounds = array<i64: 1, 64, 32>}, {transform_indices = @transform_4, window_bounds = array<i64: 1, 16, 128>}, {transform_indices = @transform_5, window_bounds = array<i64: 1, 32, 96>}, {transform_indices = @transform_6, window_bounds = array<i64: 1, 64, 32>}, {transform_indices = @transform_7, window_bounds = array<i64: 1, 13, 64>}, {pipeline_mode = #tpu.pipeline_mode<synchronous>, transform_indices = @transform_8, window_bounds = array<i64: 32, 10>}, {pipeline_mode = #tpu.pipeline_mode<synchronous>, transform_indices = @transform_9, window_bounds = array<i64: 1, 10>}, {transform_indices = @transform_10, window_bounds = array<i64: 1, 1, 10>}]} {
    %c0_i32 = arith.constant 0 : i32
    %0 = arith.cmpi eq, %arg1, %c0_i32 : i32
    %1 = arith.extui %0 : i1 to i32
    %c0_i32_0 = arith.constant 0 : i32
    %2 = arith.cmpi ne, %1, %c0_i32_0 : i32
    scf.if %2 {
      %c0_49 = arith.constant 0 : index
      %c0_50 = arith.constant 0 : index
      %180 = vector.load %arg2[%c0_49, %c0_50] : memref<16x64xf32, #tpu.memory_space<vmem>>, vector<16x64xf32>
      %c0_51 = arith.constant 0 : index
      %c0_52 = arith.constant 0 : index
      %181 = vector.load %arg3[%c0_51, %c0_52] : memref<64x32xbf16, #tpu.memory_space<vmem>>, vector<64x32xbf16>
      %182 = arith.truncf %180 : vector<16x64xf32> to vector<16x64xbf16>
      %cst_53 = arith.constant dense<0.000000e+00> : vector<16x32xf32>
      %183 = tpu.matmul %182, %181, %cst_53 {dimension_numbers = #tpu.dot_dimension_numbers<[1], [0], [0], [1], [0, 0, 1, 1], [], []>} : vector<16x64xbf16>, vector<64x32xbf16>, vector<16x32xf32> -> vector<16x32xf32>
      %c0_54 = arith.constant 0 : index
      %c0_55 = arith.constant 0 : index
      %184 = vector.load %arg4[%c0_54, %c0_55] : memref<1x32xf32, #tpu.memory_space<vmem>>, vector<1x32xf32>
      %185 = vector.broadcast %184 : vector<1x32xf32> to vector<16x32xf32>
      %186 = arith.addf %183, %185 : vector<16x32xf32>
      %c0_56 = arith.constant 0 : index
      %c0_57 = arith.constant 0 : index
      %187 = vector.load %arg13[%c0_56, %c0_57] : memref<16x32xf32, #tpu.memory_space<vmem>>, vector<16x32xf32>
      tpu.vector_store %arg13[%c0_56, %c0_57], %186 {strides = array<i32>} : memref<16x32xf32, #tpu.memory_space<vmem>>, vector<16x32xf32>,
    } else {
    }
    %c0 = arith.constant 0 : index
    %c0_1 = arith.constant 0 : index
    %3 = vector.load %arg13[%c0, %c0_1] : memref<16x32xf32, #tpu.memory_space<vmem>>, vector<16x32xf32>
    %c0_2 = arith.constant 0 : index
    %c0_3 = arith.constant 0 : index
    %c0_4 = arith.constant 0 : index
    %4 = vector.load %arg9[%c0_2, %c0_3, %c0_4] : memref<1x13x64xf32, #tpu.memory_space<vmem>>, vector<1x13x64xf32>
    %5 = vector.shape_cast %4 : vector<1x13x64xf32> to vector<13x64xf32>
    %6 = vector.extract_strided_slice %5 {offsets = [0, 0], sizes = [1, 32], strides = [1, 1]} : vector<13x64xf32> to vector<1x32xf32>
    %7 = vector.extract_strided_slice %5 {offsets = [1, 0], sizes = [1, 32], strides = [1, 1]} : vector<13x64xf32> to vector<1x32xf32>
    %cst = arith.constant dense<0.000000e+00> : vector<16xf32>
    %8 = vector.multi_reduction <add>, %3, %cst [1] : vector<16x32xf32> to vector<16xf32>
    %9 = vector.shape_cast %8 : vector<16xf32> to vector<16x1xf32>
    %cst_5 = arith.constant 3.200000e+01 : f32
    %10 = vector.broadcast %cst_5 : f32 to vector<16x1xf32>
    %11 = arith.divf %9, %10 : vector<16x1xf32>
    %12 = vector.broadcast %11 : vector<16x1xf32> to vector<16x32xf32>
    %13 = arith.subf %3, %12 : vector<16x32xf32>
    %14 = arith.mulf %13, %13 : vector<16x32xf32>
    %cst_6 = arith.constant dense<0.000000e+00> : vector<16xf32>
    %15 = vector.multi_reduction <add>, %14, %cst_6 [1] : vector<16x32xf32> to vector<16xf32>
    %16 = vector.shape_cast %15 : vector<16xf32> to vector<16x1xf32>
    %cst_7 = arith.constant 3.200000e+01 : f32
    %17 = vector.broadcast %cst_7 : f32 to vector<16x1xf32>
    %18 = arith.divf %16, %17 : vector<16x1xf32>
    %19 = vector.broadcast %11 : vector<16x1xf32> to vector<16x32xf32>
    %20 = arith.subf %3, %19 : vector<16x32xf32>
    %cst_8 = arith.constant 9.99999974E-6 : f32
    %21 = vector.broadcast %cst_8 : f32 to vector<16x1xf32>
    %22 = arith.addf %18, %21 : vector<16x1xf32>
    %23 = math.rsqrt %22 : vector<16x1xf32>
    %24 = vector.broadcast %23 : vector<16x1xf32> to vector<16x32xf32>
    %25 = arith.mulf %20, %24 : vector<16x32xf32>
    %26 = vector.broadcast %6 : vector<1x32xf32> to vector<16x32xf32>
    %27 = arith.mulf %25, %26 : vector<16x32xf32>
    %28 = vector.broadcast %7 : vector<1x32xf32> to vector<16x32xf32>
    %29 = arith.addf %27, %28 : vector<16x32xf32>
    %30 = vector.shape_cast %29 : vector<16x32xf32> to vector<1x4x4x32xf32>
    %c0_9 = arith.constant 0 : index
    %c0_10 = arith.constant 0 : index
    %c0_11 = arith.constant 0 : index
    %31 = vector.load %arg5[%c0_9, %c0_10, %c0_11] : memref<1x64x32xbf16, #tpu.memory_space<vmem>>, vector<1x64x32xbf16>
    %32 = vector.shape_cast %31 : vector<1x64x32xbf16> to vector<64x32xbf16>
    %c0_12 = arith.constant 0 : index
    %c0_13 = arith.constant 0 : index
    %c0_14 = arith.constant 0 : index
    %33 = vector.load %arg6[%c0_12, %c0_13, %c0_14] : memref<1x16x128xbf16, #tpu.memory_space<vmem>>, vector<1x16x128xbf16>
    %34 = vector.shape_cast %33 : vector<1x16x128xbf16> to vector<16x128xbf16>
    %c0_15 = arith.constant 0 : index
    %c0_16 = arith.constant 0 : index
    %c0_17 = arith.constant 0 : index
    %35 = vector.load %arg7[%c0_15, %c0_16, %c0_17] : memref<1x32x96xbf16, #tpu.memory_space<vmem>>, vector<1x32x96xbf16>
    %36 = vector.shape_cast %35 : vector<1x32x96xbf16> to vector<32x96xbf16>
    %c0_18 = arith.constant 0 : index
    %c0_19 = arith.constant 0 : index
    %c0_20 = arith.constant 0 : index
    %37 = vector.load %arg8[%c0_18, %c0_19, %c0_20] : memref<1x64x32xbf16, #tpu.memory_space<vmem>>, vector<1x64x32xbf16>
    %38 = vector.shape_cast %37 : vector<1x64x32xbf16> to vector<64x32xbf16>
    %39 = vector.extract_strided_slice %30 {offsets = [0, 0, 3, 0], sizes = [1, 4, 1, 32], strides = [1, 1, 1, 1]} : vector<1x4x4x32xf32> to vector<1x4x1x32xf32>
    %40 = vector.extract_strided_slice %30 {offsets = [0, 0, 0, 0], sizes = [1, 4, 1, 32], strides = [1, 1, 1, 1]} : vector<1x4x4x32xf32> to vector<1x4x1x32xf32>
    %41 = tpu.concatenate %39, %40 in 2 : vector<1x4x1x32xf32>, vector<1x4x1x32xf32> -> vector<1x4x2x32xf32>
    %42 = vector.shape_cast %41 : vector<1x4x2x32xf32> to vector<8x32xf32>
    %43 = vector.extract_strided_slice %30 {offsets = [0, 0, 1, 0], sizes = [1, 4, 2, 32], strides = [1, 1, 1, 1]} : vector<1x4x4x32xf32> to vector<1x4x2x32xf32>
    %44 = vector.shape_cast %43 : vector<1x4x2x32xf32> to vector<8x32xf32>
    %45 = vector.extract_strided_slice %32 {offsets = [0, 0], sizes = [32, 16], strides = [1, 1]} : vector<64x32xbf16> to vector<32x16xbf16>
    %46 = arith.truncf %42 : vector<8x32xf32> to vector<8x32xbf16>
    %cst_21 = arith.constant dense<0.000000e+00> : vector<8x16xf32>
    %47 = tpu.matmul %46, %45, %cst_21 {dimension_numbers = #tpu.dot_dimension_numbers<[1], [0], [0], [1], [0, 0, 1, 1], [], []>} : vector<8x32xbf16>, vector<32x16xbf16>, vector<8x16xf32> -> vector<8x16xf32>
    %48 = vector.extract_strided_slice %32 {offsets = [32, 0], sizes = [32, 16], strides = [1, 1]} : vector<64x32xbf16> to vector<32x16xbf16>
    %49 = arith.truncf %44 : vector<8x32xf32> to vector<8x32xbf16>
    %cst_22 = arith.constant dense<0.000000e+00> : vector<8x16xf32>
    %50 = tpu.matmul %49, %48, %cst_22 {dimension_numbers = #tpu.dot_dimension_numbers<[1], [0], [0], [1], [0, 0, 1, 1], [], []>} : vector<8x32xbf16>, vector<32x16xbf16>, vector<8x16xf32> -> vector<8x16xf32>
    %51 = arith.addf %47, %50 : vector<8x16xf32>
    %52 = vector.extract_strided_slice %5 {offsets = [2, 0], sizes = [1, 16], strides = [1, 1]} : vector<13x64xf32> to vector<1x16xf32>
    %53 = vector.broadcast %52 : vector<1x16xf32> to vector<8x16xf32>
    %54 = arith.addf %51, %53 : vector<8x16xf32>
    %cst_23 = arith.constant 5.000000e-01 : f32
    %55 = vector.broadcast %cst_23 : f32 to vector<8x16xf32>
    %56 = arith.mulf %55, %54 : vector<8x16xf32>
    %cst_24 = arith.constant 0.707106769 : f32
    %57 = vector.broadcast %cst_24 : f32 to vector<8x16xf32>
    %58 = arith.mulf %54, %57 : vector<8x16xf32>
    %59 = math.erf %58 : vector<8x16xf32>
    %cst_25 = arith.constant 1.000000e+00 : f32
    %60 = vector.broadcast %cst_25 : f32 to vector<8x16xf32>
    %61 = arith.addf %60, %59 : vector<8x16xf32>
    %62 = arith.mulf %56, %61 : vector<8x16xf32>
    %63 = vector.extract_strided_slice %34 {offsets = [0, 0], sizes = [16, 32], strides = [1, 1]} : vector<16x128xbf16> to vector<16x32xbf16>
    %64 = arith.truncf %62 : vector<8x16xf32> to vector<8x16xbf16>
    %cst_26 = arith.constant dense<0.000000e+00> : vector<8x32xf32>
    %65 = tpu.matmul %64, %63, %cst_26 {dimension_numbers = #tpu.dot_dimension_numbers<[1], [0], [0], [1], [0, 0, 1, 1], [], []>} : vector<8x16xbf16>, vector<16x32xbf16>, vector<8x32xf32> -> vector<8x32xf32>
    %66 = vector.extract_strided_slice %5 {offsets = [3, 0], sizes = [1, 32], strides = [1, 1]} : vector<13x64xf32> to vector<1x32xf32>
    %67 = vector.broadcast %66 : vector<1x32xf32> to vector<8x32xf32>
    %68 = arith.addf %65, %67 : vector<8x32xf32>
    %69 = vector.shape_cast %68 : vector<8x32xf32> to vector<1x4x2x32xf32>
    %70 = vector.extract_strided_slice %34 {offsets = [0, 32], sizes = [16, 32], strides = [1, 1]} : vector<16x128xbf16> to vector<16x32xbf16>
    %71 = arith.truncf %62 : vector<8x16xf32> to vector<8x16xbf16>
    %cst_27 = arith.constant dense<0.000000e+00> : vector<8x32xf32>
    %72 = tpu.matmul %71, %70, %cst_27 {dimension_numbers = #tpu.dot_dimension_numbers<[1], [0], [0], [1], [0, 0, 1, 1], [], []>} : vector<8x16xbf16>, vector<16x32xbf16>, vector<8x32xf32> -> vector<8x32xf32>
    %73 = vector.extract_strided_slice %5 {offsets = [4, 0], sizes = [1, 32], strides = [1, 1]} : vector<13x64xf32> to vector<1x32xf32>
    %74 = vector.broadcast %73 : vector<1x32xf32> to vector<8x32xf32>
    %75 = arith.addf %72, %74 : vector<8x32xf32>
    %76 = vector.shape_cast %75 : vector<8x32xf32> to vector<1x4x2x32xf32>
    %77 = vector.extract_strided_slice %69 {offsets = [0, 0, 1, 0], sizes = [1, 4, 1, 32], strides = [1, 1, 1, 1]} : vector<1x4x2x32xf32> to vector<1x4x1x32xf32>
    %78 = vector.extract_strided_slice %69 {offsets = [0, 0, 0, 0], sizes = [1, 4, 1, 32], strides = [1, 1, 1, 1]} : vector<1x4x2x32xf32> to vector<1x4x1x32xf32>
    %79 = tpu.concatenate %77, %76, %78 in 2 : vector<1x4x1x32xf32>, vector<1x4x2x32xf32>, vector<1x4x1x32xf32> -> vector<1x4x4x32xf32>
    %80 = vector.extract_strided_slice %30 {offsets = [0, 3, 0, 0], sizes = [1, 1, 4, 32], strides = [1, 1, 1, 1]} : vector<1x4x4x32xf32> to vector<1x1x4x32xf32>
    %81 = vector.extract_strided_slice %30 {offsets = [0, 0, 0, 0], sizes = [1, 1, 4, 32], strides = [1, 1, 1, 1]} : vector<1x4x4x32xf32> to vector<1x1x4x32xf32>
    %82 = tpu.concatenate %80, %81 in 1 : vector<1x1x4x32xf32>, vector<1x1x4x32xf32> -> vector<1x2x4x32xf32>
    %83 = vector.shape_cast %82 : vector<1x2x4x32xf32> to vector<8x32xf32>
    %84 = vector.extract_strided_slice %30 {offsets = [0, 1, 0, 0], sizes = [1, 2, 4, 32], strides = [1, 1, 1, 1]} : vector<1x4x4x32xf32> to vector<1x2x4x32xf32>
    %85 = vector.shape_cast %84 : vector<1x2x4x32xf32> to vector<8x32xf32>
    %86 = vector.extract_strided_slice %32 {offsets = [0, 16], sizes = [32, 16], strides = [1, 1]} : vector<64x32xbf16> to vector<32x16xbf16>
    %87 = arith.truncf %83 : vector<8x32xf32> to vector<8x32xbf16>
    %cst_28 = arith.constant dense<0.000000e+00> : vector<8x16xf32>
    %88 = tpu.matmul %87, %86, %cst_28 {dimension_numbers = #tpu.dot_dimension_numbers<[1], [0], [0], [1], [0, 0, 1, 1], [], []>} : vector<8x32xbf16>, vector<32x16xbf16>, vector<8x16xf32> -> vector<8x16xf32>
    %89 = vector.extract_strided_slice %32 {offsets = [32, 16], sizes = [32, 16], strides = [1, 1]} : vector<64x32xbf16> to vector<32x16xbf16>
    %90 = arith.truncf %85 : vector<8x32xf32> to vector<8x32xbf16>
    %cst_29 = arith.constant dense<0.000000e+00> : vector<8x16xf32>
    %91 = tpu.matmul %90, %89, %cst_29 {dimension_numbers = #tpu.dot_dimension_numbers<[1], [0], [0], [1], [0, 0, 1, 1], [], []>} : vector<8x32xbf16>, vector<32x16xbf16>, vector<8x16xf32> -> vector<8x16xf32>
    %92 = arith.addf %88, %91 : vector<8x16xf32>
    %93 = vector.extract_strided_slice %5 {offsets = [5, 0], sizes = [1, 16], strides = [1, 1]} : vector<13x64xf32> to vector<1x16xf32>
    %94 = vector.broadcast %93 : vector<1x16xf32> to vector<8x16xf32>
    %95 = arith.addf %92, %94 : vector<8x16xf32>
    %cst_30 = arith.constant 5.000000e-01 : f32
    %96 = vector.broadcast %cst_30 : f32 to vector<8x16xf32>
    %97 = arith.mulf %96, %95 : vector<8x16xf32>
    %cst_31 = arith.constant 0.707106769 : f32
    %98 = vector.broadcast %cst_31 : f32 to vector<8x16xf32>
    %99 = arith.mulf %95, %98 : vector<8x16xf32>
    %100 = math.erf %99 : vector<8x16xf32>
    %cst_32 = arith.constant 1.000000e+00 : f32
    %101 = vector.broadcast %cst_32 : f32 to vector<8x16xf32>
    %102 = arith.addf %101, %100 : vector<8x16xf32>
    %103 = arith.mulf %97, %102 : vector<8x16xf32>
    %104 = vector.extract_strided_slice %34 {offsets = [0, 64], sizes = [16, 32], strides = [1, 1]} : vector<16x128xbf16> to vector<16x32xbf16>
    %105 = arith.truncf %103 : vector<8x16xf32> to vector<8x16xbf16>
    %cst_33 = arith.constant dense<0.000000e+00> : vector<8x32xf32>
    %106 = tpu.matmul %105, %104, %cst_33 {dimension_numbers = #tpu.dot_dimension_numbers<[1], [0], [0], [1], [0, 0, 1, 1], [], []>} : vector<8x16xbf16>, vector<16x32xbf16>, vector<8x32xf32> -> vector<8x32xf32>
    %107 = vector.extract_strided_slice %5 {offsets = [6, 0], sizes = [1, 32], strides = [1, 1]} : vector<13x64xf32> to vector<1x32xf32>
    %108 = vector.broadcast %107 : vector<1x32xf32> to vector<8x32xf32>
    %109 = arith.addf %106, %108 : vector<8x32xf32>
    %110 = vector.shape_cast %109 : vector<8x32xf32> to vector<1x2x4x32xf32>
    %111 = vector.extract_strided_slice %34 {offsets = [0, 96], sizes = [16, 32], strides = [1, 1]} : vector<16x128xbf16> to vector<16x32xbf16>
    %112 = arith.truncf %103 : vector<8x16xf32> to vector<8x16xbf16>
    %cst_34 = arith.constant dense<0.000000e+00> : vector<8x32xf32>
    %113 = tpu.matmul %112, %111, %cst_34 {dimension_numbers = #tpu.dot_dimension_numbers<[1], [0], [0], [1], [0, 0, 1, 1], [], []>} : vector<8x16xbf16>, vector<16x32xbf16>, vector<8x32xf32> -> vector<8x32xf32>
    %114 = vector.extract_strided_slice %5 {offsets = [7, 0], sizes = [1, 32], strides = [1, 1]} : vector<13x64xf32> to vector<1x32xf32>
    %115 = vector.broadcast %114 : vector<1x32xf32> to vector<8x32xf32>
    %116 = arith.addf %113, %115 : vector<8x32xf32>
    %117 = vector.shape_cast %116 : vector<8x32xf32> to vector<1x2x4x32xf32>
    %118 = vector.extract_strided_slice %110 {offsets = [0, 1, 0, 0], sizes = [1, 1, 4, 32], strides = [1, 1, 1, 1]} : vector<1x2x4x32xf32> to vector<1x1x4x32xf32>
    %119 = vector.extract_strided_slice %110 {offsets = [0, 0, 0, 0], sizes = [1, 1, 4, 32], strides = [1, 1, 1, 1]} : vector<1x2x4x32xf32> to vector<1x1x4x32xf32>
    %120 = tpu.concatenate %118, %117, %119 in 1 : vector<1x1x4x32xf32>, vector<1x2x4x32xf32>, vector<1x1x4x32xf32> -> vector<1x4x4x32xf32>
    %121 = vector.extract_strided_slice %36 {offsets = [0, 0], sizes = [32, 32], strides = [1, 1]} : vector<32x96xbf16> to vector<32x32xbf16>
    %122 = arith.truncf %29 : vector<16x32xf32> to vector<16x32xbf16>
    %cst_35 = arith.constant dense<0.000000e+00> : vector<16x32xf32>
    %123 = tpu.matmul %122, %121, %cst_35 {dimension_numbers = #tpu.dot_dimension_numbers<[1], [0], [0], [1], [0, 0, 1, 1], [], []>} : vector<16x32xbf16>, vector<32x32xbf16>, vector<16x32xf32> -> vector<16x32xf32>
    %124 = vector.extract_strided_slice %5 {offsets = [8, 0], sizes = [1, 32], strides = [1, 1]} : vector<13x64xf32> to vector<1x32xf32>
    %125 = vector.broadcast %124 : vector<1x32xf32> to vector<16x32xf32>
    %126 = arith.addf %123, %125 : vector<16x32xf32>
    %127 = vector.shape_cast %79 : vector<1x4x4x32xf32> to vector<16x32xf32>
    %128 = arith.addf %3, %127 : vector<16x32xf32>
    %129 = vector.shape_cast %120 : vector<1x4x4x32xf32> to vector<16x32xf32>
    %130 = arith.addf %128, %129 : vector<16x32xf32>
    %131 = arith.addf %130, %126 : vector<16x32xf32>
    %132 = vector.extract_strided_slice %5 {offsets = [9, 0], sizes = [1, 32], strides = [1, 1]} : vector<13x64xf32> to vector<1x32xf32>
    %133 = vector.extract_strided_slice %5 {offsets = [10, 0], sizes = [1, 32], strides = [1, 1]} : vector<13x64xf32> to vector<1x32xf32>
    %cst_36 = arith.constant dense<0.000000e+00> : vector<16xf32>
    %134 = vector.multi_reduction <add>, %131, %cst_36 [1] : vector<16x32xf32> to vector<16xf32>
    %135 = vector.shape_cast %134 : vector<16xf32> to vector<16x1xf32>
    %cst_37 = arith.constant 3.200000e+01 : f32
    %136 = vector.broadcast %cst_37 : f32 to vector<16x1xf32>
    %137 = arith.divf %135, %136 : vector<16x1xf32>
    %138 = vector.broadcast %137 : vector<16x1xf32> to vector<16x32xf32>
    %139 = arith.subf %131, %138 : vector<16x32xf32>
    %140 = arith.mulf %139, %139 : vector<16x32xf32>
    %cst_38 = arith.constant dense<0.000000e+00> : vector<16xf32>
    %141 = vector.multi_reduction <add>, %140, %cst_38 [1] : vector<16x32xf32> to vector<16xf32>
    %142 = vector.shape_cast %141 : vector<16xf32> to vector<16x1xf32>
    %cst_39 = arith.constant 3.200000e+01 : f32
    %143 = vector.broadcast %cst_39 : f32 to vector<16x1xf32>
    %144 = arith.divf %142, %143 : vector<16x1xf32>
    %145 = vector.broadcast %137 : vector<16x1xf32> to vector<16x32xf32>
    %146 = arith.subf %131, %145 : vector<16x32xf32>
    %cst_40 = arith.constant 9.99999974E-6 : f32
    %147 = vector.broadcast %cst_40 : f32 to vector<16x1xf32>
    %148 = arith.addf %144, %147 : vector<16x1xf32>
    %149 = math.rsqrt %148 : vector<16x1xf32>
    %150 = vector.broadcast %149 : vector<16x1xf32> to vector<16x32xf32>
    %151 = arith.mulf %146, %150 : vector<16x32xf32>
    %152 = vector.broadcast %132 : vector<1x32xf32> to vector<16x32xf32>
    %153 = arith.mulf %151, %152 : vector<16x32xf32>
    %154 = vector.broadcast %133 : vector<1x32xf32> to vector<16x32xf32>
    %155 = arith.addf %153, %154 : vector<16x32xf32>
    %156 = vector.extract_strided_slice %36 {offsets = [0, 32], sizes = [32, 64], strides = [1, 1]} : vector<32x96xbf16> to vector<32x64xbf16>
    %157 = arith.truncf %155 : vector<16x32xf32> to vector<16x32xbf16>
    %cst_41 = arith.constant dense<0.000000e+00> : vector<16x64xf32>
    %158 = tpu.matmul %157, %156, %cst_41 {dimension_numbers = #tpu.dot_dimension_numbers<[1], [0], [0], [1], [0, 0, 1, 1], [], []>} : vector<16x32xbf16>, vector<32x64xbf16>, vector<16x64xf32> -> vector<16x64xf32>
    %159 = vector.extract_strided_slice %5 {offsets = [11, 0], sizes = [1, 64], strides = [1, 1]} : vector<13x64xf32> to vector<1x64xf32>
    %160 = vector.broadcast %159 : vector<1x64xf32> to vector<16x64xf32>
    %161 = arith.addf %158, %160 : vector<16x64xf32>
    %cst_42 = arith.constant 5.000000e-01 : f32
    %162 = vector.broadcast %cst_42 : f32 to vector<16x64xf32>
    %163 = arith.mulf %162, %161 : vector<16x64xf32>
    %cst_43 = arith.constant 0.707106769 : f32
    %164 = vector.broadcast %cst_43 : f32 to vector<16x64xf32>
    %165 = arith.mulf %161, %164 : vector<16x64xf32>
    %166 = math.erf %165 : vector<16x64xf32>
    %cst_44 = arith.constant 1.000000e+00 : f32
    %167 = vector.broadcast %cst_44 : f32 to vector<16x64xf32>
    %168 = arith.addf %167, %166 : vector<16x64xf32>
    %169 = arith.mulf %163, %168 : vector<16x64xf32>
    %170 = arith.truncf %169 : vector<16x64xf32> to vector<16x64xbf16>
    %cst_45 = arith.constant dense<0.000000e+00> : vector<16x32xf32>
    %171 = tpu.matmul %170, %38, %cst_45 {dimension_numbers = #tpu.dot_dimension_numbers<[1], [0], [0], [1], [0, 0, 1, 1], [], []>} : vector<16x64xbf16>, vector<64x32xbf16>, vector<16x32xf32> -> vector<16x32xf32>
    %172 = vector.extract_strided_slice %5 {offsets = [12, 0], sizes = [1, 32], strides = [1, 1]} : vector<13x64xf32> to vector<1x32xf32>
    %173 = vector.broadcast %172 : vector<1x32xf32> to vector<16x32xf32>
    %174 = arith.addf %171, %173 : vector<16x32xf32>
    %175 = arith.addf %131, %174 : vector<16x32xf32>
    %c0_46 = arith.constant 0 : index
    %c0_47 = arith.constant 0 : index
    %176 = vector.load %arg13[%c0_46, %c0_47] : memref<16x32xf32, #tpu.memory_space<vmem>>, vector<16x32xf32>
    tpu.vector_store %arg13[%c0_46, %c0_47], %175 {strides = array<i32>} : memref<16x32xf32, #tpu.memory_space<vmem>>, vector<16x32xf32>,
    %c1_i32 = arith.constant 1 : i32
    %177 = arith.cmpi eq, %arg1, %c1_i32 : i32
    %178 = arith.extui %177 : i1 to i32
    %c0_i32_48 = arith.constant 0 : i32
    %179 = arith.cmpi ne, %178, %c0_i32_48 : i32
    scf.if %179 {
      %180 = vector.shape_cast %175 : vector<16x32xf32> to vector<1x16x32xf32>
      %cst_49 = arith.constant dense<0.000000e+00> : vector<1x32xf32>
      %181 = vector.multi_reduction <add>, %180, %cst_49 [1] : vector<1x16x32xf32> to vector<1x32xf32>
      %cst_50 = arith.constant 1.600000e+01 : f32
      %182 = vector.broadcast %cst_50 : f32 to vector<1x32xf32>
      %183 = arith.divf %181, %182 : vector<1x32xf32>
      %c0_51 = arith.constant 0 : index
      %c0_52 = arith.constant 0 : index
      %184 = vector.load %arg10[%c0_51, %c0_52] : memref<32x10xbf16, #tpu.memory_space<vmem>>, vector<32x10xbf16>
      %185 = arith.truncf %183 : vector<1x32xf32> to vector<1x32xbf16>
      %cst_53 = arith.constant dense<0.000000e+00> : vector<1x10xf32>
      %186 = tpu.matmul %185, %184, %cst_53 {dimension_numbers = #tpu.dot_dimension_numbers<[1], [0], [0], [1], [0, 0, 1, 1], [], []>} : vector<1x32xbf16>, vector<32x10xbf16>, vector<1x10xf32> -> vector<1x10xf32>
      %c0_54 = arith.constant 0 : index
      %c0_55 = arith.constant 0 : index
      %187 = vector.load %arg11[%c0_54, %c0_55] : memref<1x10xf32, #tpu.memory_space<vmem>>, vector<1x10xf32>
      %188 = arith.addf %186, %187 : vector<1x10xf32>
      %189 = vector.shape_cast %188 : vector<1x10xf32> to vector<1x1x10xf32>
      %c0_56 = arith.constant 0 : index
      %c0_57 = arith.constant 0 : index
      %c0_58 = arith.constant 0 : index
      %190 = vector.load %arg12[%c0_56, %c0_57, %c0_58] : memref<1x1x10xf32, #tpu.memory_space<vmem>>, vector<1x1x10xf32>
      tpu.vector_store %arg12[%c0_56, %c0_57, %c0_58], %189 {strides = array<i32>} : memref<1x1x10xf32, #tpu.memory_space<vmem>>, vector<1x1x10xf32>,
    } else {
    }
    return
  }
  func.func @transform_0(%arg0: i32, %arg1: i32) -> (i32, i32) {
    %c0_i32 = arith.constant 0 : i32
    %c0_i32_0 = arith.constant 0 : i32
    return %arg0, %c0_i32 : i32, i32
  }
  func.func @transform_1(%arg0: i32, %arg1: i32) -> (i32, i32) {
    %c0_i32 = arith.constant 0 : i32
    %c0_i32_0 = arith.constant 0 : i32
    %c0_i32_1 = arith.constant 0 : i32
    return %c0_i32, %c0_i32_0 : i32, i32
  }
  func.func @transform_2(%arg0: i32, %arg1: i32) -> (i32, i32) {
    %c0_i32 = arith.constant 0 : i32
    %c0_i32_0 = arith.constant 0 : i32
    %c0_i32_1 = arith.constant 0 : i32
    return %c0_i32, %c0_i32_0 : i32, i32
  }
  func.func @transform_3(%arg0: i32, %arg1: i32) -> (i32, i32, i32) {
    %c0_i32 = arith.constant 0 : i32
    %c0_i32_0 = arith.constant 0 : i32
    %c0_i32_1 = arith.constant 0 : i32
    return %arg1, %c0_i32, %c0_i32_0 : i32, i32, i32
  }
  func.func @transform_4(%arg0: i32, %arg1: i32) -> (i32, i32, i32) {
    %c0_i32 = arith.constant 0 : i32
    %c0_i32_0 = arith.constant 0 : i32
    %c0_i32_1 = arith.constant 0 : i32
    return %arg1, %c0_i32, %c0_i32_0 : i32, i32, i32
  }
  func.func @transform_5(%arg0: i32, %arg1: i32) -> (i32, i32, i32) {
    %c0_i32 = arith.constant 0 : i32
    %c0_i32_0 = arith.constant 0 : i32
    %c0_i32_1 = arith.constant 0 : i32
    return %arg1, %c0_i32, %c0_i32_0 : i32, i32, i32
  }
  func.func @transform_6(%arg0: i32, %arg1: i32) -> (i32, i32, i32) {
    %c0_i32 = arith.constant 0 : i32
    %c0_i32_0 = arith.constant 0 : i32
    %c0_i32_1 = arith.constant 0 : i32
    return %arg1, %c0_i32, %c0_i32_0 : i32, i32, i32
  }
  func.func @transform_7(%arg0: i32, %arg1: i32) -> (i32, i32, i32) {
    %c0_i32 = arith.constant 0 : i32
    %c0_i32_0 = arith.constant 0 : i32
    %c0_i32_1 = arith.constant 0 : i32
    return %arg1, %c0_i32, %c0_i32_0 : i32, i32, i32
  }
  func.func @transform_8(%arg0: i32, %arg1: i32) -> (i32, i32) {
    %c0_i32 = arith.constant 0 : i32
    %c0_i32_0 = arith.constant 0 : i32
    %c0_i32_1 = arith.constant 0 : i32
    return %c0_i32, %c0_i32_0 : i32, i32
  }
  func.func @transform_9(%arg0: i32, %arg1: i32) -> (i32, i32) {
    %c0_i32 = arith.constant 0 : i32
    %c0_i32_0 = arith.constant 0 : i32
    %c0_i32_1 = arith.constant 0 : i32
    return %c0_i32, %c0_i32_0 : i32, i32
  }
  func.func @transform_10(%arg0: i32, %arg1: i32) -> (i32, i32, i32) {
    %c0_i32 = arith.constant 0 : i32
    %c0_i32_0 = arith.constant 0 : i32
    %c0_i32_1 = arith.constant 0 : i32
    return %arg0, %c0_i32, %c0_i32_0 : i32, i32, i32
  }
}

</mosaic_0001>

<llo_original>
// kernel: hire_mlp_forward.1
$region0: #{hire_mlp_forward.1}
  #allocation0 [shape = 'u32[]', space=smem, size = 0x4, offset = 0x4, fixed_abs, tag = 'smem constant byte address 0x4 - core index']
  #allocation1 [shape = 'u32[144,128]{1,0:T(1,128)}', space=vmem, size = 0x12000, scoped, tag = 'internal scratch']
  #allocation2 [shape = 'f32[16,32]{1,0:T(8,128)}', space=vmem, size = 0x2000, scoped, tag = 'scratch operand']
  %s0 = inlined_call_operand.vmem [shape: f32[32,64], index: 0, kind: input, shape index: {}]
  %s1 = inlined_call_operand.vmem [shape: bf16[64,32], index: 1, kind: input, shape index: {}]
  %s2 = inlined_call_operand.vmem [shape: f32[1,32], index: 2, kind: input, shape index: {}]
  %s3 = inlined_call_operand.vmem [shape: bf16[2,64,32], index: 3, kind: input, shape index: {}]
  %s4 = inlined_call_operand.vmem [shape: bf16[2,16,128], index: 4, kind: input, shape index: {}]
  %s5 = inlined_call_operand.vmem [shape: bf16[2,32,96], index: 5, kind: input, shape index: {}]
  %s6 = inlined_call_operand.vmem [shape: bf16[2,64,32], index: 6, kind: input, shape index: {}]
  %s7 = inlined_call_operand.vmem [shape: f32[2,13,64], index: 7, kind: input, shape index: {}]
  %s8 = inlined_call_operand.vmem [shape: bf16[32,10], index: 8, kind: input, shape index: {}]
  %s9 = inlined_call_operand.vmem [shape: f32[1,10], index: 9, kind: input, shape index: {}]
  %s10 = inlined_call_operand.hbm [shape: f32[2,1,10], index: 10, kind: output, shape index: {}]
  %s11 = sld [smem:[#allocation0]]
  $region81: #{hire_mlp_forward.1} parent=0
    _
  %s13 = ssub.s32 1, %s11
  %s14 = scalar_select 0, %s13, %s11
  $region1: #{hire_mlp_forward.1} parent=0
    #allocation3 [shape = 'u8[1024]{0}', space=vmem, size = 0x400, scoped, tag = 'output window, operand 0']
    #allocation4 [shape = 's32[2]{0}', space=sflag, size = 0x8, scoped, tag = 'scoped memory for hire_mlp_forward.1']
    %15 = vsyncpa [#allocation4], 0
    %s16 = scalar_lea.sflag [#allocation4], 1
    %17 = vsyncpa %s16, 0
    loop: start=0, step=1, limit=6
    $region2: #{hire_mlp_forward.1} parent=1 // loop_pre_header
      _
    $region3: #{hire_mlp_forward.1} parent=1 // loop_header
      %s19 = sphi 0, %s23
      %p20 = scmp.ge.s32.totalorder %s19, 6
      %s26 = sphi 0, %s38
      %s27 = sphi 0, %s34
      %s28 = sphi 0, %s26
      %s29 = sphi 0, %s27
      %s30 = sphi 0, %s28
      %s31 = sphi 0, %s29
      %s41 = sphi 0, %s43
      %s44 = sphi 0, %s41
      %s45 = sphi 0, %s44
      %s61 = sphi 0, %s45
      %s65 = sphi 0, %s65
      %s67 = sphi 0, %s65
      %s68 = sphi 0, %s67
      %s82 = sphi 0, %s68
      %s86 = sphi 0, %s86
      %s88 = sphi 0, %s86
      %s89 = sphi 0, %s88
      %s103 = sphi 0, %s89
      %s109 = sphi 0, %s111
      %s112 = sphi 0, %s109
      %s113 = sphi 0, %s112
      %s129 = sphi 0, %s113
      %s135 = sphi 0, %s137
      %s138 = sphi 0, %s135
      %s139 = sphi 0, %s138
      %s155 = sphi 0, %s139
      %s161 = sphi 0, %s163
      %s164 = sphi 0, %s161
      %s165 = sphi 0, %s164
      %s181 = sphi 0, %s165
      %s187 = sphi 0, %s189
      %s190 = sphi 0, %s187
      %s191 = sphi 0, %s190
      %s207 = sphi 0, %s191
      %s213 = sphi 0, %s215
      %s216 = sphi 0, %s213
      %s217 = sphi 0, %s216
      %s233 = sphi 0, %s217
      %s237 = sphi 0, %s237
      %s239 = sphi 0, %s237
      %s240 = sphi 0, %s239
      %s254 = sphi 0, %s240
      %s258 = sphi 0, %s258
      %s260 = sphi 0, %s258
      %s261 = sphi 0, %s260
      %s275 = sphi 0, %s261
      %s281 = sphi 0, %s283
      %s284 = sphi 0, %s281
      %s285 = sphi 0, %s284
      %s301 = sphi 0, %s285
    $region4: #{hire_mlp_forward.1} parent=1 // loop_header_branch
      %22 = sbr.rel (%p20) target = $region8
    $region5: #{hire_mlp_forward.1} parent=1 // loop_body
      %s24 = ssub.s32 %s19, 1
      %s25 = ssub.s32 %s19, 2
      %s32 = sadd.s32 1, %s27
      %p33 = scmp.ge.s32.totalorder %s32, 2
      %s34 = scalar_select %p33, 0, %s32
      %s35 = sadd.s32 1, %s26
      %s36 = scalar_select %p33, %s35, %s26
      %p37 = scmp.ge.s32.totalorder %s36, 2
      %s38 = scalar_select %p37, 0, %s36
      %s39 = ssub.s32 %s26, %s38
      %p40 = scmp.eq.s32.totalorder %s39, 0
      %s42 = sadd.s32 %s41, 1
      %s43 = scalar_select %p40, %s41, %s42
      %p46 = pneg %p40
      %p47 = scmp.eq.s32.totalorder %s19, 3
      %p48 = por %p46, %p47
      %p49 = scmp.ne.s32.totalorder %s41, %s44
      %p50 = scmp.eq.s32.totalorder %s19, 0
      %p51 = por %p49, %p50
      %p52 = scmp.ne.s32.totalorder %s41, %s44
      %p53 = scmp.eq.s32.totalorder %s24, 3
      %p54 = por %p52, %p53
      %p55 = scmp.ne.s32.totalorder %s44, %s45
      %p56 = scmp.eq.s32.totalorder %s24, 0
      %p57 = por %p55, %p56
      %p58 = scmp.ne.s32.totalorder %s44, %s45
      %p59 = scmp.eq.s32.totalorder %s25, 3
      %p60 = por %p58, %p59
      %p62 = scmp.ne.s32.totalorder %s45, %s61
      %p63 = scmp.eq.s32.totalorder %s25, 0
      %p64 = por %p62, %p63
      %s66 = sadd.s32 %s65, 1
      %p69 = scmp.eq.s32.totalorder %s19, 3
      %p70 = scmp.ne.s32.totalorder %s65, %s67
      %p71 = scmp.eq.s32.totalorder %s19, 0
      %p72 = por %p70, %p71
      %p73 = scmp.ne.s32.totalorder %s65, %s67
      %p74 = scmp.eq.s32.totalorder %s24, 3
      %p75 = por %p73, %p74
      %p76 = scmp.ne.s32.totalorder %s67, %s68
      %p77 = scmp.eq.s32.totalorder %s24, 0
      %p78 = por %p76, %p77
      %p79 = scmp.ne.s32.totalorder %s67, %s68
      %p80 = scmp.eq.s32.totalorder %s25, 3
      %p81 = por %p79, %p80
      %p83 = scmp.ne.s32.totalorder %s68, %s82
      %p84 = scmp.eq.s32.totalorder %s25, 0
      %p85 = por %p83, %p84
      %s87 = sadd.s32 %s86, 1
      %p90 = scmp.eq.s32.totalorder %s19, 3
      %p91 = scmp.ne.s32.totalorder %s86, %s88
      %p92 = scmp.eq.s32.totalorder %s19, 0
      %p93 = por %p91, %p92
      %p94 = scmp.ne.s32.totalorder %s86, %s88
      %p95 = scmp.eq.s32.totalorder %s24, 3
      %p96 = por %p94, %p95
      %p97 = scmp.ne.s32.totalorder %s88, %s89
      %p98 = scmp.eq.s32.totalorder %s24, 0
      %p99 = por %p97, %p98
      %p100 = scmp.ne.s32.totalorder %s88, %s89
      %p101 = scmp.eq.s32.totalorder %s25, 3
      %p102 = por %p100, %p101
      %p104 = scmp.ne.s32.totalorder %s89, %s103
      %p105 = scmp.eq.s32.totalorder %s25, 0
      %p106 = por %p104, %p105
      %s107 = ssub.s32 %s27, %s34
      %p108 = scmp.eq.s32.totalorder %s107, 0
      %s110 = sadd.s32 %s109, 1
      %s111 = scalar_select %p108, %s109, %s110
      %p114 = pneg %p108
      %p115 = scmp.eq.s32.totalorder %s19, 3
      %p116 = por %p114, %p115
      %p117 = scmp.ne.s32.totalorder %s109, %s112
      %p118 = scmp.eq.s32.totalorder %s19, 0
      %p119 = por %p117, %p118
      %p120 = scmp.ne.s32.totalorder %s109, %s112
      %p121 = scmp.eq.s32.totalorder %s24, 3
      %p122 = por %p120, %p121
      %p123 = scmp.ne.s32.totalorder %s112, %s113
      %p124 = scmp.eq.s32.totalorder %s24, 0
      %p125 = por %p123, %p124
      %p126 = scmp.ne.s32.totalorder %s112, %s113
      %p127 = scmp.eq.s32.totalorder %s25, 3
      %p128 = por %p126, %p127
      %p130 = scmp.ne.s32.totalorder %s113, %s129
      %p131 = scmp.eq.s32.totalorder %s25, 0
      %p132 = por %p130, %p131
      %s133 = ssub.s32 %s27, %s34
      %p134 = scmp.eq.s32.totalorder %s133, 0
      %s136 = sadd.s32 %s135, 1
      %s137 = scalar_select %p134, %s135, %s136
      %p140 = pneg %p134
      %p141 = scmp.eq.s32.totalorder %s19, 3
      %p142 = por %p140, %p141
      %p143 = scmp.ne.s32.totalorder %s135, %s138
      %p144 = scmp.eq.s32.totalorder %s19, 0
      %p145 = por %p143, %p144
      %p146 = scmp.ne.s32.totalorder %s135, %s138
      %p147 = scmp.eq.s32.totalorder %s24, 3
      %p148 = por %p146, %p147
      %p149 = scmp.ne.s32.totalorder %s138, %s139
      %p150 = scmp.eq.s32.totalorder %s24, 0
      %p151 = por %p149, %p150
      %p152 = scmp.ne.s32.totalorder %s138, %s139
      %p153 = scmp.eq.s32.totalorder %s25, 3
      %p154 = por %p152, %p153
      %p156 = scmp.ne.s32.totalorder %s139, %s155
      %p157 = scmp.eq.s32.totalorder %s25, 0
      %p158 = por %p156, %p157
      %s159 = ssub.s32 %s27, %s34
      %p160 = scmp.eq.s32.totalorder %s159, 0
      %s162 = sadd.s32 %s161, 1
      %s163 = scalar_select %p160, %s161, %s162
      %p166 = pneg %p160
      %p167 = scmp.eq.s32.totalorder %s19, 3
      %p168 = por %p166, %p167
      %p169 = scmp.ne.s32.totalorder %s161, %s164
      %p170 = scmp.eq.s32.totalorder %s19, 0
      %p171 = por %p169, %p170
      %p172 = scmp.ne.s32.totalorder %s161, %s164
      %p173 = scmp.eq.s32.totalorder %s24, 3
      %p174 = por %p172, %p173
      %p175 = scmp.ne.s32.totalorder %s164, %s165
      %p176 = scmp.eq.s32.totalorder %s24, 0
      %p177 = por %p175, %p176
      %p178 = scmp.ne.s32.totalorder %s164, %s165
      %p179 = scmp.eq.s32.totalorder %s25, 3
      %p180 = por %p178, %p179
      %p182 = scmp.ne.s32.totalorder %s165, %s181
      %p183 = scmp.eq.s32.totalorder %s25, 0
      %p184 = por %p182, %p183
      %s185 = ssub.s32 %s27, %s34
      %p186 = scmp.eq.s32.totalorder %s185, 0
      %s188 = sadd.s32 %s187, 1
      %s189 = scalar_select %p186, %s187, %s188
      %p192 = pneg %p186
      %p193 = scmp.eq.s32.totalorder %s19, 3
      %p194 = por %p192, %p193
      %p195 = scmp.ne.s32.totalorder %s187, %s190
      %p196 = scmp.eq.s32.totalorder %s19, 0
      %p197 = por %p195, %p196
      %p198 = scmp.ne.s32.totalorder %s187, %s190
      %p199 = scmp.eq.s32.totalorder %s24, 3
      %p200 = por %p198, %p199
      %p201 = scmp.ne.s32.totalorder %s190, %s191
      %p202 = scmp.eq.s32.totalorder %s24, 0
      %p203 = por %p201, %p202
      %p204 = scmp.ne.s32.totalorder %s190, %s191
      %p205 = scmp.eq.s32.totalorder %s25, 3
      %p206 = por %p204, %p205
      %p208 = scmp.ne.s32.totalorder %s191, %s207
      %p209 = scmp.eq.s32.totalorder %s25, 0
      %p210 = por %p208, %p209
      %s211 = ssub.s32 %s27, %s34
      %p212 = scmp.eq.s32.totalorder %s211, 0
      %s214 = sadd.s32 %s213, 1
      %s215 = scalar_select %p212, %s213, %s214
      %p218 = pneg %p212
      %p219 = scmp.eq.s32.totalorder %s19, 3
      %p220 = por %p218, %p219
      %p221 = scmp.ne.s32.totalorder %s213, %s216
      %p222 = scmp.eq.s32.totalorder %s19, 0
      %p223 = por %p221, %p222
      %p224 = scmp.ne.s32.totalorder %s213, %s216
      %p225 = scmp.eq.s32.totalorder %s24, 3
      %p226 = por %p224, %p225
      %p227 = scmp.ne.s32.totalorder %s216, %s217
      %p228 = scmp.eq.s32.totalorder %s24, 0
      %p229 = por %p227, %p228
      %p230 = scmp.ne.s32.totalorder %s216, %s217
      %p231 = scmp.eq.s32.totalorder %s25, 3
      %p232 = por %p230, %p231
      %p234 = scmp.ne.s32.totalorder %s217, %s233
      %p235 = scmp.eq.s32.totalorder %s25, 0
      %p236 = por %p234, %p235
      %s238 = sadd.s32 %s237, 1
      %p241 = scmp.eq.s32.totalorder %s19, 3
      %p242 = scmp.ne.s32.totalorder %s237, %s239
      %p243 = scmp.eq.s32.totalorder %s19, 0
      %p244 = por %p242, %p243
      %p245 = scmp.ne.s32.totalorder %s237, %s239
      %p246 = scmp.eq.s32.totalorder %s24, 3
      %p247 = por %p245, %p246
      %p248 = scmp.ne.s32.totalorder %s239, %s240
      %p249 = scmp.eq.s32.totalorder %s24, 0
      %p250 = por %p248, %p249
      %p251 = scmp.ne.s32.totalorder %s239, %s240
      %p252 = scmp.eq.s32.totalorder %s25, 3
      %p253 = por %p251, %p252
      %p255 = scmp.ne.s32.totalorder %s240, %s254
      %p256 = scmp.eq.s32.totalorder %s25, 0
      %p257 = por %p255, %p256
      %s259 = sadd.s32 %s258, 1
      %p262 = scmp.eq.s32.totalorder %s19, 3
      %p263 = scmp.ne.s32.totalorder %s258, %s260
      %p264 = scmp.eq.s32.totalorder %s19, 0
      %p265 = por %p263, %p264
      %p266 = scmp.ne.s32.totalorder %s258, %s260
      %p267 = scmp.eq.s32.totalorder %s24, 3
      %p268 = por %p266, %p267
      %p269 = scmp.ne.s32.totalorder %s260, %s261
      %p270 = scmp.eq.s32.totalorder %s24, 0
      %p271 = por %p269, %p270
      %p272 = scmp.ne.s32.totalorder %s260, %s261
      %p273 = scmp.eq.s32.totalorder %s25, 3
      %p274 = por %p272, %p273
      %p276 = scmp.ne.s32.totalorder %s261, %s275
      %p277 = scmp.eq.s32.totalorder %s25, 0
      %p278 = por %p276, %p277
      %s279 = ssub.s32 %s26, %s38
      %p280 = scmp.eq.s32.totalorder %s279, 0
      %s282 = sadd.s32 %s281, 1
      %s283 = scalar_select %p280, %s281, %s282
      %p286 = pneg %p280
      %p287 = scmp.eq.s32.totalorder %s19, 3
      %p288 = por %p286, %p287
      %p289 = scmp.ne.s32.totalorder %s281, %s284
      %p290 = scmp.eq.s32.totalorder %s19, 0
      %p291 = por %p289, %p290
      %p292 = scmp.ne.s32.totalorder %s281, %s284
      %p293 = scmp.eq.s32.totalorder %s24, 3
      %p294 = por %p292, %p293
      %p295 = scmp.ne.s32.totalorder %s284, %s285
      %p296 = scmp.eq.s32.totalorder %s24, 0
      %p297 = por %p295, %p296
      %p298 = scmp.ne.s32.totalorder %s284, %s285
      %p299 = scmp.eq.s32.totalorder %s25, 3
      %p300 = por %p298, %p299
      %p302 = scmp.ne.s32.totalorder %s285, %s301
      %p303 = scmp.eq.s32.totalorder %s25, 0
      %p304 = por %p302, %p303
      %p305 = scmp.le.s32.totalorder 1, %s19
      %p306 = scmp.lt.s32.totalorder %s19, 5
      %p307 = pnand %p305, %p306
      %p308 = pneg %p307
      // Predicated region
      $region9: #{hire_mlp_forward.1} parent=5 // pred_check
        _
      $region10: #{hire_mlp_forward.1} parent=5 // pred_check_branch
        %310 = sbr.rel (%p307) target = $region12
      $region11: #{hire_mlp_forward.1} parent=5 // pred_region
        %s311 = ssub.s32 %s19, 1
        // Predicated region
        $region13: #{hire_mlp_forward.1} parent=11 // pred_check
          %p312 = pneg %p78
        $region14: #{hire_mlp_forward.1} parent=11 // pred_check_branch
          %314 = sbr.rel (%p312) target = $region16
        $region15: #{hire_mlp_forward.1} parent=11 // pred_region
          _
        $region16: #{hire_mlp_forward.1} parent=11 // pred_fallthru
          _
        // Predicated region
        $region17: #{hire_mlp_forward.1} parent=11 // pred_check
          %p315 = pneg %p99
        $region18: #{hire_mlp_forward.1} parent=11 // pred_check_branch
          %317 = sbr.rel (%p315) target = $region20
        $region19: #{hire_mlp_forward.1} parent=11 // pred_region
          _
        $region20: #{hire_mlp_forward.1} parent=11 // pred_fallthru
          _
        // Predicated region
        $region21: #{hire_mlp_forward.1} parent=11 // pred_check
          %p318 = pneg %p250
        $region22: #{hire_mlp_forward.1} parent=11 // pred_check_branch
          %320 = sbr.rel (%p318) target = $region24
        $region23: #{hire_mlp_forward.1} parent=11 // pred_region
          _
        $region24: #{hire_mlp_forward.1} parent=11 // pred_fallthru
          _
        // Predicated region
        $region25: #{hire_mlp_forward.1} parent=11 // pred_check
          %p321 = pneg %p271
        $region26: #{hire_mlp_forward.1} parent=11 // pred_check_branch
          %323 = sbr.rel (%p321) target = $region28
        $region27: #{hire_mlp_forward.1} parent=11 // pred_region
          _
        $region28: #{hire_mlp_forward.1} parent=11 // pred_fallthru
          _
      $region12: #{hire_mlp_forward.1} parent=5 // pred_fallthru
        _
      %p324 = scmp.lt.s32.totalorder %s19, 4
      // Predicated region
      $region29: #{hire_mlp_forward.1} parent=5 // pred_check
        %p325 = pneg %p324
      $region30: #{hire_mlp_forward.1} parent=5 // pred_check_branch
        %327 = sbr.rel (%p325) target = $region32
      $region31: #{hire_mlp_forward.1} parent=5 // pred_region
        // Predicated region
        $region33: #{hire_mlp_forward.1} parent=31 // pred_check
          %p328 = pneg %p51
        $region34: #{hire_mlp_forward.1} parent=31 // pred_check_branch
          %330 = sbr.rel (%p328) target = $region36
        $region35: #{hire_mlp_forward.1} parent=31 // pred_region
          %s331 = smul.u32 2, %s26
          %p332 = scmp.lt.s32.totalorder %s331, 3
          %s333 = scalar_select %p332, %s331, 3
          %s334 = smul.addr %s333, 8
          %s335 = scalar_lea.vmem %s0, %s334
          %s336 = smul.u32 2, %s26
        $region36: #{hire_mlp_forward.1} parent=31 // pred_fallthru
          _
        // Predicated region
        $region37: #{hire_mlp_forward.1} parent=31 // pred_check
          %p337 = pneg %p119
        $region38: #{hire_mlp_forward.1} parent=31 // pred_check_branch
          %339 = sbr.rel (%p337) target = $region40
        $region39: #{hire_mlp_forward.1} parent=31 // pred_region
          %p340 = scmp.lt.s32.totalorder %s27, 1
          %s341 = scalar_select %p340, %s27, 1
          %s342 = smul.addr %s341, 8
          %s343 = smul.addr %s342, 4
          %s344 = scalar_lea.vmem %s3, %s343
        $region40: #{hire_mlp_forward.1} parent=31 // pred_fallthru
          _
        // Predicated region
        $region41: #{hire_mlp_forward.1} parent=31 // pred_check
          %p345 = pneg %p145
        $region42: #{hire_mlp_forward.1} parent=31 // pred_check_branch
          %347 = sbr.rel (%p345) target = $region44
        $region43: #{hire_mlp_forward.1} parent=31 // pred_region
          %p348 = scmp.lt.s32.totalorder %s27, 1
          %s349 = scalar_select %p348, %s27, 1
          %s350 = smul.addr %s349, 2
          %s351 = smul.addr %s350, 4
          %s352 = scalar_lea.vmem %s4, %s351
        $region44: #{hire_mlp_forward.1} parent=31 // pred_fallthru
          _
        // Predicated region
        $region45: #{hire_mlp_forward.1} parent=31 // pred_check
          %p353 = pneg %p171
        $region46: #{hire_mlp_forward.1} parent=31 // pred_check_branch
          %355 = sbr.rel (%p353) target = $region48
        $region47: #{hire_mlp_forward.1} parent=31 // pred_region
          %p356 = scmp.lt.s32.totalorder %s27, 1
          %s357 = scalar_select %p356, %s27, 1
          %s358 = smul.addr %s357, 4
          %s359 = smul.addr %s358, 4
          %s360 = scalar_lea.vmem %s5, %s359
        $region48: #{hire_mlp_forward.1} parent=31 // pred_fallthru
          _
        // Predicated region
        $region49: #{hire_mlp_forward.1} parent=31 // pred_check
          %p361 = pneg %p197
        $region50: #{hire_mlp_forward.1} parent=31 // pred_check_branch
          %363 = sbr.rel (%p361) target = $region52
        $region51: #{hire_mlp_forward.1} parent=31 // pred_region
          %p364 = scmp.lt.s32.totalorder %s27, 1
          %s365 = scalar_select %p364, %s27, 1
          %s366 = smul.addr %s365, 8
          %s367 = smul.addr %s366, 4
          %s368 = scalar_lea.vmem %s6, %s367
        $region52: #{hire_mlp_forward.1} parent=31 // pred_fallthru
          _
        // Predicated region
        $region53: #{hire_mlp_forward.1} parent=31 // pred_check
          %p369 = pneg %p223
        $region54: #{hire_mlp_forward.1} parent=31 // pred_check_branch
          %371 = sbr.rel (%p369) target = $region56
        $region55: #{hire_mlp_forward.1} parent=31 // pred_region
          %p372 = scmp.lt.s32.totalorder %s27, 1
          %s373 = scalar_select %p372, %s27, 1
          %s374 = smul.addr %s373, 2
          %s375 = smul.addr %s374, 8
          %s376 = scalar_lea.vmem %s7, %s375
        $region56: #{hire_mlp_forward.1} parent=31 // pred_fallthru
          _
      $region32: #{hire_mlp_forward.1} parent=5 // pred_fallthru
        _
      %p377 = scmp.le.s32.totalorder 1, %s19
      %p378 = scmp.lt.s32.totalorder %s19, 5
      %p379 = pnand %p377, %p378
      %p380 = pneg %p379
      // Predicated region
      $region57: #{hire_mlp_forward.1} parent=5 // pred_check
        _
      $region58: #{hire_mlp_forward.1} parent=5 // pred_check_branch
        %382 = sbr.rel (%p379) target = $region60
      $region59: #{hire_mlp_forward.1} parent=5 // pred_region
        %s383 = ssub.s32 %s19, 1
        %s384 = smul.u32 2, %s28
        %p385 = scmp.lt.s32.totalorder %s384, 3
        %s386 = scalar_select %p385, %s384, 3
        %s387 = smul.addr %s386, 8
        %s388 = scalar_lea.vmem %s0, %s387
        %p389 = pneg %p57
        %p390 = pneg %p54
        %p391 = pneg %p78
        %p392 = pneg %p75
        %p393 = pneg %p99
        %p394 = pneg %p96
        %p395 = scmp.lt.s32.totalorder %s29, 1
        %s396 = scalar_select %p395, %s29, 1
        %s397 = smul.addr %s396, 8
        %s398 = smul.addr %s397, 4
        %s399 = scalar_lea.vmem %s3, %s398
        %p400 = pneg %p125
        %p401 = pneg %p122
        %p402 = scmp.lt.s32.totalorder %s29, 1
        %s403 = scalar_select %p402, %s29, 1
        %s404 = smul.addr %s403, 2
        %s405 = smul.addr %s404, 4
        %s406 = scalar_lea.vmem %s4, %s405
        %p407 = pneg %p151
        %p408 = pneg %p148
        %p409 = scmp.lt.s32.totalorder %s29, 1
        %s410 = scalar_select %p409, %s29, 1
        %s411 = smul.addr %s410, 4
        %s412 = smul.addr %s411, 4
        %s413 = scalar_lea.vmem %s5, %s412
        %p414 = pneg %p177
        %p415 = pneg %p174
        %p416 = scmp.lt.s32.totalorder %s29, 1
        %s417 = scalar_select %p416, %s29, 1
        %s418 = smul.addr %s417, 8
        %s419 = smul.addr %s418, 4
        %s420 = scalar_lea.vmem %s6, %s419
        %p421 = pneg %p203
        %p422 = pneg %p200
        %p423 = scmp.lt.s32.totalorder %s29, 1
        %s424 = scalar_select %p423, %s29, 1
        %s425 = smul.addr %s424, 2
        %s426 = smul.addr %s425, 8
        %s427 = scalar_lea.vmem %s7, %s426
        %p428 = pneg %p229
        %p429 = pneg %p226
        %p430 = pneg %p250
        %p431 = pneg %p247
        %p432 = pneg %p271
        %p433 = pneg %p268
        %p434 = pneg %p297
        %p435 = pneg %p294
        %s436 = sand.u32 %s284, 1
        %s437 = scalar_lea.sflag [#allocation4], %s436
        %s438 = sand.u32 %s284, 1
        %s439 = scalar_lea.vmem [#allocation3], %s438
        %s440 = smul.u32 2, %s28
        %p441 = scmp.lt.s32.totalorder %s440, 3
        %s442 = scalar_select %p441, %s440, 3
        %s443 = smul.addr %s442, 8
        %s444 = scalar_lea.vmem %s0, %s443
        %s445 = smul.u32 2, %s28
        %p446 = scmp.lt.s32.totalorder %s29, 1
        %s447 = scalar_select %p446, %s29, 1
        %s448 = smul.addr %s447, 8
        %s449 = smul.addr %s448, 4
        %s450 = scalar_lea.vmem %s3, %s449
        %p451 = scmp.lt.s32.totalorder %s29, 1
        %s452 = scalar_select %p451, %s29, 1
        %s453 = smul.addr %s452, 2
        %s454 = smul.addr %s453, 4
        %s455 = scalar_lea.vmem %s4, %s454
        %p456 = scmp.lt.s32.totalorder %s29, 1
        %s457 = scalar_select %p456, %s29, 1
        %s458 = smul.addr %s457, 4
        %s459 = smul.addr %s458, 4
        %s460 = scalar_lea.vmem %s5, %s459
        %p461 = scmp.lt.s32.totalorder %s29, 1
        %s462 = scalar_select %p461, %s29, 1
        %s463 = smul.addr %s462, 8
        %s464 = smul.addr %s463, 4
        %s465 = scalar_lea.vmem %s6, %s464
        %p466 = scmp.lt.s32.totalorder %s29, 1
        %s467 = scalar_select %p466, %s29, 1
        %s468 = smul.addr %s467, 2
        %s469 = smul.addr %s468, 8
        %s470 = scalar_lea.vmem %s7, %s469
        %p472 = scmp.eq.s32.totalorder %s29, 0
        // Predicated region
        $region61: #{hire_mlp_forward.1} parent=59 // pred_check
          %p473 = pneg %p472
        $region62: #{hire_mlp_forward.1} parent=59 // pred_check_branch
          %475 = sbr.rel (%p473) target = $region64
        $region63: #{hire_mlp_forward.1} parent=59 // pred_region
          %v476 = vld [vmem:[%s444] sm:$0xff]
          %v477 = vld [vmem:[%s444 + $0x8] sm:$0xff]
          %v478 = vld [vmem:[%s1] sm:$0xf]
          %v479 = vld [vmem:[%s1 + $0x4] sm:$0xf]
          %v480 = vld [vmem:[%s1 + $0x8] sm:$0xf]
          %v481 = vld [vmem:[%s1 + $0xc] sm:$0xf]
          %v482 = vld [vmem:[%s1 + $0x10] sm:$0xf]
          %v483 = vld [vmem:[%s1 + $0x14] sm:$0xf]
          %v484 = vld [vmem:[%s1 + $0x18] sm:$0xf]
          %v485 = vld [vmem:[%s1 + $0x1c] sm:$0xf]
          %v486 = vpack.c.bf16 %v477, %v476
          %v487 = vld [vmem:[%s2] sm:$0x1]
          %v489 = vlaneseq
          %v490 = vshrl.u32 %v489, 7
          %v491 = vsub.s32 0, %v490
          %v492 = vrot.slane %v487, %v491
          %v502 = vunpack.c.l.b16 %v478
          %v503 = vunpack.c.l.b16 %v479
          %v504 = vunpack.c.l.b16 %v480
          %v505 = vunpack.c.l.b16 %v481
          %v506 = vunpack.c.l.b16 %v482
          %v507 = vunpack.c.l.b16 %v483
          %v508 = vunpack.c.l.b16 %v484
          %v509 = vunpack.c.l.b16 %v485
          %v510 = vpack.c.b16 %v503, %v502
          %v511 = vpack.c.b16 %v505, %v504
          %v512 = vpack.c.b16 %v507, %v506
          %v513 = vpack.c.b16 %v509, %v508
          %vm518 = vcmask 523264
          %v520 = vsel %vm518, %v486, 0
          %522 = vmatprep.subr.bf16.mxu0 0
          %523 = vmatpush1.bf16.msra.mxu0 %v510
          %524 = vmatprep.subr.bf16.mxu0 0
          %525 = vmatpush1.bf16.msra.mxu0 %v511
          %526 = vmatprep.subr.bf16.mxu0 0
          %527 = vmatpush1.bf16.msra.mxu0 %v512
          %528 = vmatprep.subr.bf16.mxu0 0
          %529 = vmatpush1.bf16.msra.mxu0 %v513
          %530 = vmatprep.subr.bf16.mxu0 0
          %531 = vmatpush1.bf16.msra.mxu0 0
          %532 = vmatprep.subr.bf16.mxu0 0
          %533 = vmatpush1.bf16.msra.mxu0 0
          %534 = vmatprep.subr.bf16.mxu0 0
          %535 = vmatpush1.bf16.msra.mxu0 0
          %536 = vmatprep.subr.bf16.mxu0 0
          %537 = vmatpush1.bf16.msra.mxu0 0
          %538 = vmatprep.subr.bf16.mxu0 0
          %539 = vmatpush1.bf16.msra.mxu0 0
          %540 = vmatprep.subr.bf16.mxu0 0
          %541 = vmatpush1.bf16.msra.mxu0 0
          %542 = vmatprep.subr.bf16.mxu0 0
          %543 = vmatpush1.bf16.msra.mxu0 0
          %544 = vmatprep.subr.bf16.mxu0 0
          %545 = vmatpush1.bf16.msra.mxu0 0
          %546 = vmatprep.subr.bf16.mxu0 0
          %547 = vmatpush1.bf16.msra.mxu0 0
          %548 = vmatprep.subr.bf16.mxu0 0
          %549 = vmatpush1.bf16.msra.mxu0 0
          %550 = vmatprep.subr.bf16.mxu0 0
          %551 = vmatpush1.bf16.msra.mxu0 0
          %552 = vmatprep.subr.bf16.mxu0 0
          %553 = vmatpush1.bf16.msra.mxu0 0
          %554 = vmatprep.mubr.bf16.mxu0 0
          %555 = vmatmul.mubr.bf16.gmra.mrb[0].mxu0 %v520
          %v556 = vpop.f32.mrb[0].mxu0
          %v557 = vadd.f32 %v492, %v556
          %v558 = vpop.f32.mrb[0].mxu0
          %v559 = vpop.f32.mrb[0].mxu0
          %v560 = vadd.f32 %v492, %v559
          %v561 = vpop.f32.mrb[0].mxu0
          %562 = vdwg.mxu0
          %vm563 = vcmask 261120
          %564 = vst.msk [vmem:[#allocation2] sm:$0xff] %vm563, %v557
          %565 = vst.msk [vmem:[#allocation2 + $0x8] sm:$0xff] %vm563, %v560
        $region64: #{hire_mlp_forward.1} parent=59 // pred_fallthru
          _
        %v566 = vld [vmem:[#allocation2] sm:$0xff]
        %v567 = vld [vmem:[#allocation2 + $0x8] sm:$0xff]
        %v568 = vld [vmem:[%s470] sm:$0xff]
        %v569 = vld [vmem:[%s470 + $0x8] sm:$0x1f]
        %vm570 = vcmask 261120
        %v571 = vsel %vm570, %v566, 0.0
        %572 = vadd.xlane.f32.xlu0 %v571
        %v573 = vpop.xlane.xlu0 %572
        %v574 = vsel %vm570, %v567, 0.0
        %575 = vadd.xlane.f32.xlu0 %v574
        %v576 = vpop.xlane.xlu0 %575
        %v577 = vrcp.pop 32.0
        %v578 = vmul.f32 %v573, %v577
        %v579 = vmul.f32 %v576, %v577
        %v580 = vsub.f32 %v566, %v578
        %v581 = vsub.f32 %v567, %v579
        %v582 = vmul.f32 %v580, %v580
        %v583 = vmul.f32 %v581, %v581
        %v584 = vsel %vm570, %v582, 0.0
        %585 = vadd.xlane.f32.xlu0 %v584
        %v586 = vpop.xlane.xlu0 %585
        %v587 = vsel %vm570, %v583, 0.0
        %588 = vadd.xlane.f32.xlu0 %v587
        %v589 = vpop.xlane.xlu0 %588
        %v590 = vmul.f32 %v586, %v577
        %v591 = vmul.f32 %v589, %v577
        %v592 = vadd.f32 %v590, 1e-05
        %v593 = vadd.f32 %v591, 1e-05
        %v594 = vrsqrt.pop %v592
        %v595 = vrsqrt.pop %v593
        %v596 = vmul.f32 %v580, %v594
        %v597 = vmul.f32 %v581, %v595
        %v598 = vlaneseq
        %v599 = vshrl.u32 %v598, 7
        %v600 = vsub.s32 0, %v599
        %v601 = vrot.slane %v568, %v600
        %v602 = vmul.f32 %v596, %v601
        %v603 = vmul.f32 %v597, %v601
        %v604 = vlaneseq
        %v605 = vshrl.u32 %v604, 7
        %v606 = vsub.s32 1, %v605
        %v607 = vrot.slane %v568, %v606
        %v608 = vadd.f32 %v602, %v607
        %v609 = vadd.f32 %v603, %v607
        %v612 = vcombine.high %v608, %v608
        %v613 = vcombine.high %v609, %v609
        %v614 = vld [vmem:[%s450] sm:$0xf]
        %v615 = vld [vmem:[%s450 + $0x4] sm:$0xf]
        %v616 = vld [vmem:[%s450 + $0x8] sm:$0xf]
        %v617 = vld [vmem:[%s450 + $0xc] sm:$0xf]
        %v618 = vld [vmem:[%s450 + $0x10] sm:$0xf]
        %v619 = vld [vmem:[%s450 + $0x14] sm:$0xf]
        %v620 = vld [vmem:[%s450 + $0x18] sm:$0xf]
        %v621 = vld [vmem:[%s450 + $0x1c] sm:$0xf]
        %v622 = vld [vmem:[%s455] sm:$0xf]
        %v623 = vld [vmem:[%s455 + $0x4] sm:$0xf]
        %v624 = vld [vmem:[%s460] sm:$0xf]
        %v625 = vld [vmem:[%s460 + $0x4] sm:$0xf]
        %v626 = vld [vmem:[%s460 + $0x8] sm:$0xf]
        %v627 = vld [vmem:[%s460 + $0xc] sm:$0xf]
        %v628 = vld [vmem:[%s465] sm:$0xf]
        %v629 = vld [vmem:[%s465 + $0x4] sm:$0xf]
        %v630 = vld [vmem:[%s465 + $0x8] sm:$0xf]
        %v631 = vld [vmem:[%s465 + $0xc] sm:$0xf]
        %v632 = vld [vmem:[%s465 + $0x10] sm:$0xf]
        %v633 = vld [vmem:[%s465 + $0x14] sm:$0xf]
        %v634 = vld [vmem:[%s465 + $0x18] sm:$0xf]
        %v635 = vld [vmem:[%s465 + $0x1c] sm:$0xf]
        %v636 = vlaneseq
        %v637 = vshrl.u32 %v636, 7
        %v638 = vsub.s32 3, %v637
        %v639 = vrot.slane %v608, %v638
        %v640 = vlaneseq
        %v641 = vshrl.u32 %v640, 7
        %v642 = vsub.s32 3, %v641
        %v643 = vrot.slane %v612, %v642
        %v644 = vlaneseq
        %v645 = vshrl.u32 %v644, 7
        %v646 = vsub.s32 3, %v645
        %v647 = vrot.slane %v609, %v646
        %v648 = vlaneseq
        %v649 = vshrl.u32 %v648, 7
        %v650 = vsub.s32 3, %v649
        %v651 = vrot.slane %v613, %v650
        %v656 = vlaneseq
        %v657 = vshrl.u32 %v656, 7
        %v658 = vsub.s32 0, %v657
        %v659 = vrot.slane %v608, %v658
        %v660 = vlaneseq
        %v661 = vshrl.u32 %v660, 7
        %v662 = vsub.s32 0, %v661
        %v663 = vrot.slane %v612, %v662
        %v664 = vlaneseq
        %v665 = vshrl.u32 %v664, 7
        %v666 = vsub.s32 0, %v665
        %v667 = vrot.slane %v609, %v666
        %v668 = vlaneseq
        %v669 = vshrl.u32 %v668, 7
        %v670 = vsub.s32 0, %v669
        %v671 = vrot.slane %v613, %v670
        %vm676 = vcmask 1040384
        %v677 = vsel %vm676, %v639, %v659
        %v678 = vsel %vm676, %v643, %v663
        %v679 = vsel %vm676, %v647, %v667
        %v680 = vsel %vm676, %v651, %v671
        %v682 = vunpack.c.l.s4 1983009808
        %v683 = vunpack.c.0.s8 %v682
        %v684 = vlaneseq
        %v685 = vshrl.u32 %v684, 7
        %v686 = vsub.s32 %v683, %v685
        %v687 = vrot.slane %v608, %v686
        %v688 = vcombine.high %v687, %v687
        %v690 = vunpack.c.l.s4 1983009808
        %v691 = vunpack.c.0.s8 %v690
        %v692 = vlaneseq
        %v693 = vshrl.u32 %v692, 7
        %v694 = vsub.s32 %v691, %v693
        %v695 = vrot.slane %v612, %v694
        %v696 = vcombine.high %v695, %v695
        %v698 = vunpack.c.l.s4 1983009808
        %v699 = vunpack.c.0.s8 %v698
        %v700 = vlaneseq
        %v701 = vshrl.u32 %v700, 7
        %v702 = vsub.s32 %v699, %v701
        %v703 = vrot.slane %v609, %v702
        %v704 = vcombine.high %v703, %v703
        %v706 = vunpack.c.l.s4 1983009808
        %v707 = vunpack.c.0.s8 %v706
        %v708 = vlaneseq
        %v709 = vshrl.u32 %v708, 7
        %v710 = vsub.s32 %v707, %v709
        %v711 = vrot.slane %v613, %v710
        %v712 = vcombine.high %v711, %v711
        %vm713 = vcmask 1042434
        %vm714 = vmor %vm676, %vm713
        %vm715 = vcmask 1044484
        %vm716 = vmor %vm714, %vm715
        %vm717 = vcmask 1046534
        %vm718 = vmor %vm716, %vm717
        %v719 = vrot.slane %v687, 7
        %v720 = vrot.slane %v719, 2
        %v721 = vrot.slane %v688, 7
        %v722 = vsel %vm718, %v720, %v721
        %v723 = vrot.slane %v695, 7
        %v724 = vrot.slane %v723, 2
        %v725 = vrot.slane %v696, 7
        %v726 = vsel %vm718, %v724, %v725
        %v727 = vrot.slane %v703, 7
        %v728 = vrot.slane %v727, 2
        %v729 = vrot.slane %v704, 7
        %v730 = vsel %vm718, %v728, %v729
        %v731 = vrot.slane %v711, 7
        %v732 = vrot.slane %v731, 2
        %v733 = vrot.slane %v712, 7
        %v734 = vsel %vm718, %v732, %v733
        %v739 = vcombine.low %v677, %v678
        %v740 = vcombine.low %v679, %v680
        %v742 = vunpack.c.l.s4 1983009808
        %v743 = vunpack.c.0.s8 %v742
        %v744 = vlaneseq
        %v745 = vshrl.u32 %v744, 7
        %v746 = vsub.s32 %v743, %v745
        %v747 = vrot.slane %v739, %v746
        %v749 = vunpack.c.l.s4 1983009808
        %v750 = vunpack.c.0.s8 %v749
        %v751 = vlaneseq
        %v752 = vshrl.u32 %v751, 7
        %v753 = vsub.s32 %v750, %v752
        %v754 = vrot.slane %v740, %v753
        %v755 = vcombine.low %v747, %v754
        %v757 = vpack.c.bf16 %v755, %v755
        %v758 = vcombine.low %v722, %v726
        %v759 = vcombine.low %v730, %v734
        %v761 = vunpack.c.l.s4 1983009808
        %v762 = vunpack.c.0.s8 %v761
        %v763 = vlaneseq
        %v764 = vshrl.u32 %v763, 7
        %v765 = vsub.s32 %v762, %v764
        %v766 = vrot.slane %v758, %v765
        %v768 = vunpack.c.l.s4 1983009808
        %v769 = vunpack.c.0.s8 %v768
        %v770 = vlaneseq
        %v771 = vshrl.u32 %v770, 7
        %v772 = vsub.s32 %v769, %v771
        %v773 = vrot.slane %v759, %v772
        %v774 = vcombine.low %v766, %v773
        %v776 = vpack.c.bf16 %v774, %v774
        %v781 = vunpack.c.l.b16 %v618
        %v782 = vunpack.c.l.b16 %v619
        %v783 = vunpack.c.l.b16 %v620
        %v784 = vunpack.c.l.b16 %v621
        %v785 = vpack.c.b16 %v782, %v781
        %v786 = vpack.c.b16 %v784, %v783
        %v790 = vsel %vm570, %v776, 0
        %792 = vmatprep.subr.bf16.mxu0 0
        %793 = vmatpush1.bf16.msra.mxu0 %v785
        %794 = vmatprep.subr.bf16.mxu0 0
        %795 = vmatpush1.bf16.msra.mxu0 %v786
        %796 = vmatprep.subr.bf16.mxu0 0
        %797 = vmatpush1.bf16.msra.mxu0 0
        %798 = vmatprep.subr.bf16.mxu0 0
        %799 = vmatpush1.bf16.msra.mxu0 0
        %800 = vmatprep.subr.bf16.mxu0 0
        %801 = vmatpush1.bf16.msra.mxu0 0
        %802 = vmatprep.subr.bf16.mxu0 0
        %803 = vmatpush1.bf16.msra.mxu0 0
        %804 = vmatprep.subr.bf16.mxu0 0
        %805 = vmatpush1.bf16.msra.mxu0 0
        %806 = vmatprep.subr.bf16.mxu0 0
        %807 = vmatpush1.bf16.msra.mxu0 0
        %808 = vmatprep.subr.bf16.mxu0 0
        %809 = vmatpush1.bf16.msra.mxu0 0
        %810 = vmatprep.subr.bf16.mxu0 0
        %811 = vmatpush1.bf16.msra.mxu0 0
        %812 = vmatprep.subr.bf16.mxu0 0
        %813 = vmatpush1.bf16.msra.mxu0 0
        %814 = vmatprep.subr.bf16.mxu0 0
        %815 = vmatpush1.bf16.msra.mxu0 0
        %816 = vmatprep.subr.bf16.mxu0 0
        %817 = vmatpush1.bf16.msra.mxu0 0
        %818 = vmatprep.subr.bf16.mxu0 0
        %819 = vmatpush1.bf16.msra.mxu0 0
        %820 = vmatprep.subr.bf16.mxu0 0
        %821 = vmatpush1.bf16.msra.mxu0 0
        %822 = vmatprep.subr.bf16.mxu0 0
        %823 = vmatpush1.bf16.msra.mxu0 0
        %824 = vmatprep.mubr.bf16.mxu0 0
        %825 = vmatmul.mubr.bf16.gmra.mrb[0].mxu0 %v790
        %v826 = vpop.f32.mrb[0].mxu0
        %v827 = vadd.f32 0.0, %v826
        %v828 = vpop.f32.mrb[0].mxu0
        %v829 = vpop.f32.mrb[0].mxu0
        %v830 = vpop.f32.mrb[0].mxu0
        %831 = vdwg.mxu0
        %v836 = vunpack.c.l.b16 %v614
        %v837 = vunpack.c.l.b16 %v615
        %v838 = vunpack.c.l.b16 %v616
        %v839 = vunpack.c.l.b16 %v617
        %v840 = vpack.c.b16 %v837, %v836
        %v841 = vpack.c.b16 %v839, %v838
        %v845 = vsel %vm570, %v757, 0
        %847 = vmatprep.subr.bf16.mxu0 0
        %848 = vmatpush1.bf16.msra.mxu0 %v840
        %849 = vmatprep.subr.bf16.mxu0 0
        %850 = vmatpush1.bf16.msra.mxu0 %v841
        %851 = vmatprep.subr.bf16.mxu0 0
        %852 = vmatpush1.bf16.msra.mxu0 0
        %853 = vmatprep.subr.bf16.mxu0 0
        %854 = vmatpush1.bf16.msra.mxu0 0
        %855 = vmatprep.subr.bf16.mxu0 0
        %856 = vmatpush1.bf16.msra.mxu0 0
        %857 = vmatprep.subr.bf16.mxu0 0
        %858 = vmatpush1.bf16.msra.mxu0 0
        %859 = vmatprep.subr.bf16.mxu0 0
        %860 = vmatpush1.bf16.msra.mxu0 0
        %861 = vmatprep.subr.bf16.mxu0 0
        %862 = vmatpush1.bf16.msra.mxu0 0
        %863 = vmatprep.subr.bf16.mxu0 0
        %864 = vmatpush1.bf16.msra.mxu0 0
        %865 = vmatprep.subr.bf16.mxu0 0
        %866 = vmatpush1.bf16.msra.mxu0 0
        %867 = vmatprep.subr.bf16.mxu0 0
        %868 = vmatpush1.bf16.msra.mxu0 0
        %869 = vmatprep.subr.bf16.mxu0 0
        %870 = vmatpush1.bf16.msra.mxu0 0
        %871 = vmatprep.subr.bf16.mxu0 0
        %872 = vmatpush1.bf16.msra.mxu0 0
        %873 = vmatprep.subr.bf16.mxu0 0
        %874 = vmatpush1.bf16.msra.mxu0 0
        %875 = vmatprep.subr.bf16.mxu0 0
        %876 = vmatpush1.bf16.msra.mxu0 0
        %877 = vmatprep.subr.bf16.mxu0 0
        %878 = vmatpush1.bf16.msra.mxu0 0
        %879 = vmatprep.mubr.bf16.mxu0 0
        %880 = vmatmul.mubr.bf16.gmra.mrb[0].mxu0 %v845
        %v881 = vpop.f32.mrb[0].mxu0
        %v882 = vadd.f32 %v827, %v881
        %v883 = vpop.f32.mrb[0].mxu0
        %v884 = vpop.f32.mrb[0].mxu0
        %v885 = vpop.f32.mrb[0].mxu0
        %886 = vdwg.mxu0
        %v887 = vlaneseq
        %v888 = vshrl.u32 %v887, 7
        %v889 = vsub.s32 2, %v888
        %v890 = vrot.slane %v568, %v889
        %v891 = vadd.f32 %v882, %v890
        %v892 = vmul.f32 %v891, 0.5
        %v893 = vmul.f32 %v891, 0.70710677
        %v894 = verf.f32.pop %v893
        %v895 = vadd.f32 %v894, 1.0
        %v896 = vmul.f32 %v892, %v895
        %v897 = vpack.c.bf16 %v896, %v896
        %v898 = vlaneseq
        %v899 = vshrl.u32 %v898, 7
        %v900 = vsub.s32 3, %v899
        %v901 = vrot.slane %v568, %v900
        %v904 = vunpack.c.l.b16 %v622
        %v905 = vunpack.c.l.b16 %v623
        %v906 = vpack.c.b16 %v905, %v904
        %vm908 = vcmask 130048
        %v910 = vsel %vm908, %v897, 0
        %912 = vmatprep.subr.bf16.mxu0 0
        %913 = vmatpush1.bf16.msra.mxu0 %v906
        %914 = vmatprep.subr.bf16.mxu0 0
        %915 = vmatpush1.bf16.msra.mxu0 0
        %916 = vmatprep.subr.bf16.mxu0 0
        %917 = vmatpush1.bf16.msra.mxu0 0
        %918 = vmatprep.subr.bf16.mxu0 0
        %919 = vmatpush1.bf16.msra.mxu0 0
        %920 = vmatprep.subr.bf16.mxu0 0
        %921 = vmatpush1.bf16.msra.mxu0 0
        %922 = vmatprep.subr.bf16.mxu0 0
        %923 = vmatpush1.bf16.msra.mxu0 0
        %924 = vmatprep.subr.bf16.mxu0 0
        %925 = vmatpush1.bf16.msra.mxu0 0
        %926 = vmatprep.subr.bf16.mxu0 0
        %927 = vmatpush1.bf16.msra.mxu0 0
        %928 = vmatprep.subr.bf16.mxu0 0
        %929 = vmatpush1.bf16.msra.mxu0 0
        %930 = vmatprep.subr.bf16.mxu0 0
        %931 = vmatpush1.bf16.msra.mxu0 0
        %932 = vmatprep.subr.bf16.mxu0 0
        %933 = vmatpush1.bf16.msra.mxu0 0
        %934 = vmatprep.subr.bf16.mxu0 0
        %935 = vmatpush1.bf16.msra.mxu0 0
        %936 = vmatprep.subr.bf16.mxu0 0
        %937 = vmatpush1.bf16.msra.mxu0 0
        %938 = vmatprep.subr.bf16.mxu0 0
        %939 = vmatpush1.bf16.msra.mxu0 0
        %940 = vmatprep.subr.bf16.mxu0 0
        %941 = vmatpush1.bf16.msra.mxu0 0
        %942 = vmatprep.subr.bf16.mxu0 0
        %943 = vmatpush1.bf16.msra.mxu0 0
        %944 = vmatprep.mubr.bf16.mxu0 0
        %945 = vmatmul.mubr.bf16.gmra.mrb[0].mxu0 %v910
        %v946 = vpop.f32.mrb[0].mxu0
        %v947 = vadd.f32 %v901, %v946
        %v948 = vpop.f32.mrb[0].mxu0
        %v949 = vpop.f32.mrb[0].mxu0
        %v950 = vpop.f32.mrb[0].mxu0
        %951 = vdwg.mxu0
        %v953 = vcombine.high %v947, %v947
        %v955 = vunpack.c.l.s4 1983009808
        %v956 = vunpack.c.0.s8 %v955
        %v957 = vlaneseq
        %v958 = vshrl.u32 %v957, 7
        %v959 = vsub.s32 %v956, %v958
        %v960 = vrot.slane %v947, %v959
        %v962 = vunpack.c.l.s4 1983009808
        %v963 = vunpack.c.0.s8 %v962
        %v964 = vlaneseq
        %v965 = vshrl.u32 %v964, 7
        %v966 = vsub.s32 %v963, %v965
        %v967 = vrot.slane %v953, %v966
        %v968 = vcombine.high %v960, %v960
        %v969 = vcombine.high %v967, %v967
        %v970 = vlaneseq
        %v971 = vshrl.u32 %v970, 7
        %v972 = vsub.s32 4, %v971
        %v973 = vrot.slane %v568, %v972
        %974 = vrot.lane.b32.xlu0 %v906, 96
        %v975 = vpop.permute.xlu0 %974
        %977 = vmatprep.subr.bf16.mxu0 0
        %978 = vmatpush1.bf16.msra.mxu0 %v975
        %979 = vmatprep.subr.bf16.mxu0 0
        %980 = vmatpush1.bf16.msra.mxu0 0
        %981 = vmatprep.subr.bf16.mxu0 0
        %982 = vmatpush1.bf16.msra.mxu0 0
        %983 = vmatprep.subr.bf16.mxu0 0
        %984 = vmatpush1.bf16.msra.mxu0 0
        %985 = vmatprep.subr.bf16.mxu0 0
        %986 = vmatpush1.bf16.msra.mxu0 0
        %987 = vmatprep.subr.bf16.mxu0 0
        %988 = vmatpush1.bf16.msra.mxu0 0
        %989 = vmatprep.subr.bf16.mxu0 0
        %990 = vmatpush1.bf16.msra.mxu0 0
        %991 = vmatprep.subr.bf16.mxu0 0
        %992 = vmatpush1.bf16.msra.mxu0 0
        %993 = vmatprep.subr.bf16.mxu0 0
        %994 = vmatpush1.bf16.msra.mxu0 0
        %995 = vmatprep.subr.bf16.mxu0 0
        %996 = vmatpush1.bf16.msra.mxu0 0
        %997 = vmatprep.subr.bf16.mxu0 0
        %998 = vmatpush1.bf16.msra.mxu0 0
        %999 = vmatprep.subr.bf16.mxu0 0
        %1000 = vmatpush1.bf16.msra.mxu0 0
        %1001 = vmatprep.subr.bf16.mxu0 0
        %1002 = vmatpush1.bf16.msra.mxu0 0
        %1003 = vmatprep.subr.bf16.mxu0 0
        %1004 = vmatpush1.bf16.msra.mxu0 0
        %1005 = vmatprep.subr.bf16.mxu0 0
        %1006 = vmatpush1.bf16.msra.mxu0 0
        %1007 = vmatprep.subr.bf16.mxu0 0
        %1008 = vmatpush1.bf16.msra.mxu0 0
        %1009 = vmatprep.mubr.bf16.mxu0 0
        %1010 = vmatmul.mubr.bf16.gmra.mrb[0].mxu0 %v910
        %v1011 = vpop.f32.mrb[0].mxu0
        %v1012 = vadd.f32 %v973, %v1011
        %v1013 = vpop.f32.mrb[0].mxu0
        %v1014 = vpop.f32.mrb[0].mxu0
        %v1015 = vpop.f32.mrb[0].mxu0
        %1016 = vdwg.mxu0
        %v1018 = vcombine.high %v1012, %v1012
        %v1020 = vunpack.c.l.s4 1983009808
        %v1021 = vunpack.c.0.s8 %v1020
        %v1022 = vlaneseq
        %v1023 = vshrl.u32 %v1022, 7
        %v1024 = vsub.s32 %v1021, %v1023
        %v1025 = vrot.slane %v1012, %v1024
        %v1027 = vunpack.c.l.s4 1983009808
        %v1028 = vunpack.c.0.s8 %v1027
        %v1029 = vlaneseq
        %v1030 = vshrl.u32 %v1029, 7
        %v1031 = vsub.s32 %v1028, %v1030
        %v1032 = vrot.slane %v1018, %v1031
        %v1033 = vcombine.high %v1025, %v1025
        %v1034 = vcombine.high %v1032, %v1032
        %v1035 = vlaneseq
        %v1036 = vshrl.u32 %v1035, 7
        %v1037 = vsub.s32 1, %v1036
        %v1038 = vrot.slane %v960, %v1037
        %v1039 = vlaneseq
        %v1040 = vshrl.u32 %v1039, 7
        %v1041 = vsub.s32 1, %v1040
        %v1042 = vrot.slane %v968, %v1041
        %v1043 = vlaneseq
        %v1044 = vshrl.u32 %v1043, 7
        %v1045 = vsub.s32 1, %v1044
        %v1046 = vrot.slane %v967, %v1045
        %v1047 = vlaneseq
        %v1048 = vshrl.u32 %v1047, 7
        %v1049 = vsub.s32 1, %v1048
        %v1050 = vrot.slane %v969, %v1049
        %v1056 = vunpack.c.l.s4 1983009808
        %v1057 = vunpack.c.0.s8 %v1056
        %v1058 = vlaneseq
        %v1059 = vshrl.u32 %v1058, 7
        %v1060 = vsub.s32 %v1057, %v1059
        %v1061 = vrot.slane %v1025, %v1060
        %v1063 = vunpack.c.l.s4 1983009808
        %v1064 = vunpack.c.0.s8 %v1063
        %v1065 = vlaneseq
        %v1066 = vshrl.u32 %v1065, 7
        %v1067 = vsub.s32 %v1064, %v1066
        %v1068 = vrot.slane %v1033, %v1067
        %v1070 = vunpack.c.l.s4 1983009808
        %v1071 = vunpack.c.0.s8 %v1070
        %v1072 = vlaneseq
        %v1073 = vshrl.u32 %v1072, 7
        %v1074 = vsub.s32 %v1071, %v1073
        %v1075 = vrot.slane %v1032, %v1074
        %v1077 = vunpack.c.l.s4 1983009808
        %v1078 = vunpack.c.0.s8 %v1077
        %v1079 = vlaneseq
        %v1080 = vshrl.u32 %v1079, 7
        %v1081 = vsub.s32 %v1078, %v1080
        %v1082 = vrot.slane %v1034, %v1081
        %v1083 = vrot.slane %v1061, 7
        %v1084 = vrot.slane %v1068, 7
        %v1085 = vrot.slane %v1075, 7
        %v1086 = vrot.slane %v1082, 7
        %v1091 = vlaneseq
        %v1092 = vshrl.u32 %v1091, 7
        %v1093 = vsub.s32 0, %v1092
        %v1094 = vrot.slane %v960, %v1093
        %v1095 = vlaneseq
        %v1096 = vshrl.u32 %v1095, 7
        %v1097 = vsub.s32 0, %v1096
        %v1098 = vrot.slane %v968, %v1097
        %v1099 = vlaneseq
        %v1100 = vshrl.u32 %v1099, 7
        %v1101 = vsub.s32 0, %v1100
        %v1102 = vrot.slane %v967, %v1101
        %v1103 = vlaneseq
        %v1104 = vshrl.u32 %v1103, 7
        %v1105 = vsub.s32 0, %v1104
        %v1106 = vrot.slane %v969, %v1105
        %v1111 = vsel %vm676, %v1038, %v1083
        %v1112 = vsel %vm676, %v1042, %v1084
        %v1113 = vsel %vm676, %v1046, %v1085
        %v1114 = vsel %vm676, %v1050, %v1086
        %vm1115 = vcmask 1042432
        %v1116 = vsel %vm1115, %v1111, %v1094
        %v1117 = vsel %vm1115, %v1112, %v1098
        %v1118 = vsel %vm1115, %v1113, %v1102
        %v1119 = vsel %vm1115, %v1114, %v1106
        %v1120 = vcombine.low %v613, %v608
        %v1122 = vpack.c.bf16 %v1120, %v1120
        %v1123 = vcombine.low %v612, %v609
        %v1125 = vpack.c.bf16 %v1123, %v1123
        %1126 = vrot.lane.b32.xlu0 %v785, 112
        %v1127 = vpop.permute.xlu0 %1126
        %1128 = vrot.lane.b32.xlu0 %v786, 112
        %v1129 = vpop.permute.xlu0 %1128
        %v1133 = vsel %vm570, %v1125, 0
        %1135 = vmatprep.subr.bf16.mxu0 0
        %1136 = vmatpush1.bf16.msra.mxu0 %v1127
        %1137 = vmatprep.subr.bf16.mxu0 0
        %1138 = vmatpush1.bf16.msra.mxu0 %v1129
        %1139 = vmatprep.subr.bf16.mxu0 0
        %1140 = vmatpush1.bf16.msra.mxu0 0
        %1141 = vmatprep.subr.bf16.mxu0 0
        %1142 = vmatpush1.bf16.msra.mxu0 0
        %1143 = vmatprep.subr.bf16.mxu0 0
        %1144 = vmatpush1.bf16.msra.mxu0 0
        %1145 = vmatprep.subr.bf16.mxu0 0
        %1146 = vmatpush1.bf16.msra.mxu0 0
        %1147 = vmatprep.subr.bf16.mxu0 0
        %1148 = vmatpush1.bf16.msra.mxu0 0
        %1149 = vmatprep.subr.bf16.mxu0 0
        %1150 = vmatpush1.bf16.msra.mxu0 0
        %1151 = vmatprep.subr.bf16.mxu0 0
        %1152 = vmatpush1.bf16.msra.mxu0 0
        %1153 = vmatprep.subr.bf16.mxu0 0
        %1154 = vmatpush1.bf16.msra.mxu0 0
        %1155 = vmatprep.subr.bf16.mxu0 0
        %1156 = vmatpush1.bf16.msra.mxu0 0
        %1157 = vmatprep.subr.bf16.mxu0 0
        %1158 = vmatpush1.bf16.msra.mxu0 0
        %1159 = vmatprep.subr.bf16.mxu0 0
        %1160 = vmatpush1.bf16.msra.mxu0 0
        %1161 = vmatprep.subr.bf16.mxu0 0
        %1162 = vmatpush1.bf16.msra.mxu0 0
        %1163 = vmatprep.subr.bf16.mxu0 0
        %1164 = vmatpush1.bf16.msra.mxu0 0
        %1165 = vmatprep.subr.bf16.mxu0 0
        %1166 = vmatpush1.bf16.msra.mxu0 0
        %1167 = vmatprep.mubr.bf16.mxu0 0
        %1168 = vmatmul.mubr.bf16.gmra.mrb[0].mxu0 %v1133
        %v1169 = vpop.f32.mrb[0].mxu0
        %v1170 = vadd.f32 0.0, %v1169
        %v1171 = vpop.f32.mrb[0].mxu0
        %v1172 = vpop.f32.mrb[0].mxu0
        %v1173 = vpop.f32.mrb[0].mxu0
        %1174 = vdwg.mxu0
        %1175 = vrot.lane.b32.xlu0 %v840, 112
        %v1176 = vpop.permute.xlu0 %1175
        %1177 = vrot.lane.b32.xlu0 %v841, 112
        %v1178 = vpop.permute.xlu0 %1177
        %v1182 = vsel %vm570, %v1122, 0
        %1184 = vmatprep.subr.bf16.mxu0 0
        %1185 = vmatpush1.bf16.msra.mxu0 %v1176
        %1186 = vmatprep.subr.bf16.mxu0 0
        %1187 = vmatpush1.bf16.msra.mxu0 %v1178
        %1188 = vmatprep.subr.bf16.mxu0 0
        %1189 = vmatpush1.bf16.msra.mxu0 0
        %1190 = vmatprep.subr.bf16.mxu0 0
        %1191 = vmatpush1.bf16.msra.mxu0 0
        %1192 = vmatprep.subr.bf16.mxu0 0
        %1193 = vmatpush1.bf16.msra.mxu0 0
        %1194 = vmatprep.subr.bf16.mxu0 0
        %1195 = vmatpush1.bf16.msra.mxu0 0
        %1196 = vmatprep.subr.bf16.mxu0 0
        %1197 = vmatpush1.bf16.msra.mxu0 0
        %1198 = vmatprep.subr.bf16.mxu0 0
        %1199 = vmatpush1.bf16.msra.mxu0 0
        %1200 = vmatprep.subr.bf16.mxu0 0
        %1201 = vmatpush1.bf16.msra.mxu0 0
        %1202 = vmatprep.subr.bf16.mxu0 0
        %1203 = vmatpush1.bf16.msra.mxu0 0
        %1204 = vmatprep.subr.bf16.mxu0 0
        %1205 = vmatpush1.bf16.msra.mxu0 0
        %1206 = vmatprep.subr.bf16.mxu0 0
        %1207 = vmatpush1.bf16.msra.mxu0 0
        %1208 = vmatprep.subr.bf16.mxu0 0
        %1209 = vmatpush1.bf16.msra.mxu0 0
        %1210 = vmatprep.subr.bf16.mxu0 0
        %1211 = vmatpush1.bf16.msra.mxu0 0
        %1212 = vmatprep.subr.bf16.mxu0 0
        %1213 = vmatpush1.bf16.msra.mxu0 0
        %1214 = vmatprep.subr.bf16.mxu0 0
        %1215 = vmatpush1.bf16.msra.mxu0 0
        %1216 = vmatprep.mubr.bf16.mxu0 0
        %1217 = vmatmul.mubr.bf16.gmra.mrb[0].mxu0 %v1182
        %v1218 = vpop.f32.mrb[0].mxu0
        %v1219 = vadd.f32 %v1170, %v1218
        %v1220 = vpop.f32.mrb[0].mxu0
        %v1221 = vpop.f32.mrb[0].mxu0
        %v1222 = vpop.f32.mrb[0].mxu0
        %1223 = vdwg.mxu0
        %v1224 = vlaneseq
        %v1225 = vshrl.u32 %v1224, 7
        %v1226 = vsub.s32 5, %v1225
        %v1227 = vrot.slane %v568, %v1226
        %v1228 = vadd.f32 %v1219, %v1227
        %v1229 = vmul.f32 %v1228, 0.5
        %v1230 = vmul.f32 %v1228, 0.70710677
        %v1231 = verf.f32.pop %v1230
        %v1232 = vadd.f32 %v1231, 1.0
        %v1233 = vmul.f32 %v1229, %v1232
        %v1234 = vpack.c.bf16 %v1233, %v1233
        %v1235 = vlaneseq
        %v1236 = vshrl.u32 %v1235, 7
        %v1237 = vsub.s32 6, %v1236
        %v1238 = vrot.slane %v568, %v1237
        %1239 = vrot.lane.b32.xlu0 %v906, 64
        %v1240 = vpop.permute.xlu0 %1239
        %v1243 = vsel %vm908, %v1234, 0
        %1245 = vmatprep.subr.bf16.mxu0 0
        %1246 = vmatpush1.bf16.msra.mxu0 %v1240
        %1247 = vmatprep.subr.bf16.mxu0 0
        %1248 = vmatpush1.bf16.msra.mxu0 0
        %1249 = vmatprep.subr.bf16.mxu0 0
        %1250 = vmatpush1.bf16.msra.mxu0 0
        %1251 = vmatprep.subr.bf16.mxu0 0
        %1252 = vmatpush1.bf16.msra.mxu0 0
        %1253 = vmatprep.subr.bf16.mxu0 0
        %1254 = vmatpush1.bf16.msra.mxu0 0
        %1255 = vmatprep.subr.bf16.mxu0 0
        %1256 = vmatpush1.bf16.msra.mxu0 0
        %1257 = vmatprep.subr.bf16.mxu0 0
        %1258 = vmatpush1.bf16.msra.mxu0 0
        %1259 = vmatprep.subr.bf16.mxu0 0
        %1260 = vmatpush1.bf16.msra.mxu0 0
        %1261 = vmatprep.subr.bf16.mxu0 0
        %1262 = vmatpush1.bf16.msra.mxu0 0
        %1263 = vmatprep.subr.bf16.mxu0 0
        %1264 = vmatpush1.bf16.msra.mxu0 0
        %1265 = vmatprep.subr.bf16.mxu0 0
        %1266 = vmatpush1.bf16.msra.mxu0 0
        %1267 = vmatprep.subr.bf16.mxu0 0
        %1268 = vmatpush1.bf16.msra.mxu0 0
        %1269 = vmatprep.subr.bf16.mxu0 0
        %1270 = vmatpush1.bf16.msra.mxu0 0
        %1271 = vmatprep.subr.bf16.mxu0 0
        %1272 = vmatpush1.bf16.msra.mxu0 0
        %1273 = vmatprep.subr.bf16.mxu0 0
        %1274 = vmatpush1.bf16.msra.mxu0 0
        %1275 = vmatprep.subr.bf16.mxu0 0
        %1276 = vmatpush1.bf16.msra.mxu0 0
        %1277 = vmatprep.mubr.bf16.mxu0 0
        %1278 = vmatmul.mubr.bf16.gmra.mrb[0].mxu0 %v1243
        %v1279 = vpop.f32.mrb[0].mxu0
        %v1280 = vadd.f32 %v1238, %v1279
        %v1281 = vpop.f32.mrb[0].mxu0
        %v1282 = vpop.f32.mrb[0].mxu0
        %v1283 = vpop.f32.mrb[0].mxu0
        %1284 = vdwg.mxu0
        %v1286 = vcombine.high %v1280, %v1280
        %v1287 = vlaneseq
        %v1288 = vshrl.u32 %v1287, 7
        %v1289 = vsub.s32 7, %v1288
        %v1290 = vrot.slane %v568, %v1289
        %1291 = vrot.lane.b32.xlu0 %v906, 32
        %v1292 = vpop.permute.xlu0 %1291
        %1294 = vmatprep.subr.bf16.mxu0 0
        %1295 = vmatpush1.bf16.msra.mxu0 %v1292
        %1296 = vmatprep.subr.bf16.mxu0 0
        %1297 = vmatpush1.bf16.msra.mxu0 0
        %1298 = vmatprep.subr.bf16.mxu0 0
        %1299 = vmatpush1.bf16.msra.mxu0 0
        %1300 = vmatprep.subr.bf16.mxu0 0
        %1301 = vmatpush1.bf16.msra.mxu0 0
        %1302 = vmatprep.subr.bf16.mxu0 0
        %1303 = vmatpush1.bf16.msra.mxu0 0
        %1304 = vmatprep.subr.bf16.mxu0 0
        %1305 = vmatpush1.bf16.msra.mxu0 0
        %1306 = vmatprep.subr.bf16.mxu0 0
        %1307 = vmatpush1.bf16.msra.mxu0 0
        %1308 = vmatprep.subr.bf16.mxu0 0
        %1309 = vmatpush1.bf16.msra.mxu0 0
        %1310 = vmatprep.subr.bf16.mxu0 0
        %1311 = vmatpush1.bf16.msra.mxu0 0
        %1312 = vmatprep.subr.bf16.mxu0 0
        %1313 = vmatpush1.bf16.msra.mxu0 0
        %1314 = vmatprep.subr.bf16.mxu0 0
        %1315 = vmatpush1.bf16.msra.mxu0 0
        %1316 = vmatprep.subr.bf16.mxu0 0
        %1317 = vmatpush1.bf16.msra.mxu0 0
        %1318 = vmatprep.subr.bf16.mxu0 0
        %1319 = vmatpush1.bf16.msra.mxu0 0
        %1320 = vmatprep.subr.bf16.mxu0 0
        %1321 = vmatpush1.bf16.msra.mxu0 0
        %1322 = vmatprep.subr.bf16.mxu0 0
        %1323 = vmatpush1.bf16.msra.mxu0 0
        %1324 = vmatprep.subr.bf16.mxu0 0
        %1325 = vmatpush1.bf16.msra.mxu0 0
        %1326 = vmatprep.mubr.bf16.mxu0 0
        %1327 = vmatmul.mubr.bf16.gmra.mrb[0].mxu0 %v1243
        %v1328 = vpop.f32.mrb[0].mxu0
        %v1329 = vadd.f32 %v1290, %v1328
        %v1330 = vpop.f32.mrb[0].mxu0
        %v1331 = vpop.f32.mrb[0].mxu0
        %v1332 = vpop.f32.mrb[0].mxu0
        %1333 = vdwg.mxu0
        %v1335 = vcombine.high %v1329, %v1329
        %v1336 = vpack.c.bf16 %v609, %v608
        %v1337 = vlaneseq
        %v1338 = vshrl.u32 %v1337, 7
        %v1339 = vsub.s32 0, %v1338
        %v1340 = vrot.slane %v569, %v1339
        %v1345 = vunpack.c.l.b16 %v624
        %v1346 = vunpack.c.l.b16 %v625
        %v1347 = vunpack.c.l.b16 %v626
        %v1348 = vunpack.c.l.b16 %v627
        %v1349 = vpack.c.b16 %v1346, %v1345
        %v1350 = vpack.c.b16 %v1348, %v1347
        %v1354 = vsel %vm570, %v1336, 0
        %1356 = vmatprep.subr.bf16.mxu0 0
        %1357 = vmatpush1.bf16.msra.mxu0 %v1349
        %1358 = vmatprep.subr.bf16.mxu0 0
        %1359 = vmatpush1.bf16.msra.mxu0 %v1350
        %1360 = vmatprep.subr.bf16.mxu0 0
        %1361 = vmatpush1.bf16.msra.mxu0 0
        %1362 = vmatprep.subr.bf16.mxu0 0
        %1363 = vmatpush1.bf16.msra.mxu0 0
        %1364 = vmatprep.subr.bf16.mxu0 0
        %1365 = vmatpush1.bf16.msra.mxu0 0
        %1366 = vmatprep.subr.bf16.mxu0 0
        %1367 = vmatpush1.bf16.msra.mxu0 0
        %1368 = vmatprep.subr.bf16.mxu0 0
        %1369 = vmatpush1.bf16.msra.mxu0 0
        %1370 = vmatprep.subr.bf16.mxu0 0
        %1371 = vmatpush1.bf16.msra.mxu0 0
        %1372 = vmatprep.subr.bf16.mxu0 0
        %1373 = vmatpush1.bf16.msra.mxu0 0
        %1374 = vmatprep.subr.bf16.mxu0 0
        %1375 = vmatpush1.bf16.msra.mxu0 0
        %1376 = vmatprep.subr.bf16.mxu0 0
        %1377 = vmatpush1.bf16.msra.mxu0 0
        %1378 = vmatprep.subr.bf16.mxu0 0
        %1379 = vmatpush1.bf16.msra.mxu0 0
        %1380 = vmatprep.subr.bf16.mxu0 0
        %1381 = vmatpush1.bf16.msra.mxu0 0
        %1382 = vmatprep.subr.bf16.mxu0 0
        %1383 = vmatpush1.bf16.msra.mxu0 0
        %1384 = vmatprep.subr.bf16.mxu0 0
        %1385 = vmatpush1.bf16.msra.mxu0 0
        %1386 = vmatprep.subr.bf16.mxu0 0
        %1387 = vmatpush1.bf16.msra.mxu0 0
        %1388 = vmatprep.mubr.bf16.mxu0 0
        %1389 = vmatmul.mubr.bf16.gmra.mrb[0].mxu0 %v1354
        %v1390 = vpop.f32.mrb[0].mxu0
        %v1391 = vadd.f32 %v1340, %v1390
        %v1392 = vpop.f32.mrb[0].mxu0
        %v1393 = vpop.f32.mrb[0].mxu0
        %v1394 = vadd.f32 %v1340, %v1393
        %v1395 = vpop.f32.mrb[0].mxu0
        %1396 = vdwg.mxu0
        %v1401 = vcombine.low %v1116, %v1117
        %v1402 = vcombine.low %v1118, %v1119
        %v1405 = vadd.f32 %v566, %v1401
        %v1406 = vadd.f32 %v567, %v1402
        %v1407 = vcombine.low %v1286, %v1329
        %v1408 = vcombine.low %v1335, %v1280
        %v1411 = vadd.f32 %v1405, %v1407
        %v1412 = vadd.f32 %v1406, %v1408
        %v1413 = vadd.f32 %v1411, %v1391
        %v1414 = vadd.f32 %v1412, %v1394
        %v1415 = vsel %vm570, %v1413, 0.0
        %1416 = vadd.xlane.f32.xlu0 %v1415
        %v1417 = vpop.xlane.xlu0 %1416
        %v1418 = vsel %vm570, %v1414, 0.0
        %1419 = vadd.xlane.f32.xlu0 %v1418
        %v1420 = vpop.xlane.xlu0 %1419
        %v1421 = vmul.f32 %v1417, %v577
        %v1422 = vmul.f32 %v1420, %v577
        %v1423 = vsub.f32 %v1413, %v1421
        %v1424 = vsub.f32 %v1414, %v1422
        %v1425 = vmul.f32 %v1423, %v1423
        %v1426 = vmul.f32 %v1424, %v1424
        %v1427 = vsel %vm570, %v1425, 0.0
        %1428 = vadd.xlane.f32.xlu0 %v1427
        %v1429 = vpop.xlane.xlu0 %1428
        %v1430 = vsel %vm570, %v1426, 0.0
        %1431 = vadd.xlane.f32.xlu0 %v1430
        %v1432 = vpop.xlane.xlu0 %1431
        %v1433 = vmul.f32 %v1429, %v577
        %v1434 = vmul.f32 %v1432, %v577
        %v1435 = vadd.f32 %v1433, 1e-05
        %v1436 = vadd.f32 %v1434, 1e-05
        %v1437 = vrsqrt.pop %v1435
        %v1438 = vrsqrt.pop %v1436
        %v1439 = vmul.f32 %v1423, %v1437
        %v1440 = vmul.f32 %v1424, %v1438
        %v1441 = vlaneseq
        %v1442 = vshrl.u32 %v1441, 7
        %v1443 = vsub.s32 1, %v1442
        %v1444 = vrot.slane %v569, %v1443
        %v1445 = vmul.f32 %v1439, %v1444
        %v1446 = vmul.f32 %v1440, %v1444
        %v1447 = vlaneseq
        %v1448 = vshrl.u32 %v1447, 7
        %v1449 = vsub.s32 2, %v1448
        %v1450 = vrot.slane %v569, %v1449
        %v1451 = vadd.f32 %v1445, %v1450
        %v1452 = vadd.f32 %v1446, %v1450
        %v1453 = vpack.c.bf16 %v1452, %v1451
        %v1454 = vlaneseq
        %v1455 = vshrl.u32 %v1454, 7
        %v1456 = vsub.s32 3, %v1455
        %v1457 = vrot.slane %v569, %v1456
        %1458 = vrot.lane.b32.xlu0 %v1349, 96
        %v1459 = vpop.permute.xlu0 %1458
        %1460 = vrot.lane.b32.xlu0 %v1350, 96
        %v1461 = vpop.permute.xlu0 %1460
        %v1465 = vsel %vm570, %v1453, 0
        %1467 = vmatprep.subr.bf16.mxu0 0
        %1468 = vmatpush1.bf16.msra.mxu0 %v1459
        %1469 = vmatprep.subr.bf16.mxu0 0
        %1470 = vmatpush1.bf16.msra.mxu0 %v1461
        %1471 = vmatprep.subr.bf16.mxu0 0
        %1472 = vmatpush1.bf16.msra.mxu0 0
        %1473 = vmatprep.subr.bf16.mxu0 0
        %1474 = vmatpush1.bf16.msra.mxu0 0
        %1475 = vmatprep.subr.bf16.mxu0 0
        %1476 = vmatpush1.bf16.msra.mxu0 0
        %1477 = vmatprep.subr.bf16.mxu0 0
        %1478 = vmatpush1.bf16.msra.mxu0 0
        %1479 = vmatprep.subr.bf16.mxu0 0
        %1480 = vmatpush1.bf16.msra.mxu0 0
        %1481 = vmatprep.subr.bf16.mxu0 0
        %1482 = vmatpush1.bf16.msra.mxu0 0
        %1483 = vmatprep.subr.bf16.mxu0 0
        %1484 = vmatpush1.bf16.msra.mxu0 0
        %1485 = vmatprep.subr.bf16.mxu0 0
        %1486 = vmatpush1.bf16.msra.mxu0 0
        %1487 = vmatprep.subr.bf16.mxu0 0
        %1488 = vmatpush1.bf16.msra.mxu0 0
        %1489 = vmatprep.subr.bf16.mxu0 0
        %1490 = vmatpush1.bf16.msra.mxu0 0
        %1491 = vmatprep.subr.bf16.mxu0 0
        %1492 = vmatpush1.bf16.msra.mxu0 0
        %1493 = vmatprep.subr.bf16.mxu0 0
        %1494 = vmatpush1.bf16.msra.mxu0 0
        %1495 = vmatprep.subr.bf16.mxu0 0
        %1496 = vmatpush1.bf16.msra.mxu0 0
        %1497 = vmatprep.subr.bf16.mxu0 0
        %1498 = vmatpush1.bf16.msra.mxu0 0
        %1499 = vmatprep.mubr.bf16.mxu0 0
        %1500 = vmatmul.mubr.bf16.gmra.mrb[0].mxu0 %v1465
        %v1501 = vpop.f32.mrb[0].mxu0
        %v1502 = vadd.f32 %v1457, %v1501
        %v1503 = vpop.f32.mrb[0].mxu0
        %v1504 = vpop.f32.mrb[0].mxu0
        %v1505 = vadd.f32 %v1457, %v1504
        %v1506 = vpop.f32.mrb[0].mxu0
        %1507 = vdwg.mxu0
        %v1508 = vmul.f32 %v1502, 0.5
        %v1509 = vmul.f32 %v1505, 0.5
        %v1510 = vmul.f32 %v1502, 0.70710677
        %v1511 = vmul.f32 %v1505, 0.70710677
        %v1512 = verf.f32.pop %v1510
        %v1513 = verf.f32.pop %v1511
        %v1514 = vadd.f32 %v1512, 1.0
        %v1515 = vadd.f32 %v1513, 1.0
        %v1516 = vmul.f32 %v1508, %v1514
        %v1517 = vmul.f32 %v1509, %v1515
        %v1518 = vpack.c.bf16 %v1517, %v1516
        %v1519 = vlaneseq
        %v1520 = vshrl.u32 %v1519, 7
        %v1521 = vsub.s32 4, %v1520
        %v1522 = vrot.slane %v569, %v1521
        %v1531 = vunpack.c.l.b16 %v628
        %v1532 = vunpack.c.l.b16 %v629
        %v1533 = vunpack.c.l.b16 %v630
        %v1534 = vunpack.c.l.b16 %v631
        %v1535 = vunpack.c.l.b16 %v632
        %v1536 = vunpack.c.l.b16 %v633
        %v1537 = vunpack.c.l.b16 %v634
        %v1538 = vunpack.c.l.b16 %v635
        %v1539 = vpack.c.b16 %v1532, %v1531
        %v1540 = vpack.c.b16 %v1534, %v1533
        %v1541 = vpack.c.b16 %v1536, %v1535
        %v1542 = vpack.c.b16 %v1538, %v1537
        %vm1547 = vcmask 523264
        %v1549 = vsel %vm1547, %v1518, 0
        %1551 = vmatprep.subr.bf16.mxu0 0
        %1552 = vmatpush1.bf16.msra.mxu0 %v1539
        %1553 = vmatprep.subr.bf16.mxu0 0
        %1554 = vmatpush1.bf16.msra.mxu0 %v1540
        %1555 = vmatprep.subr.bf16.mxu0 0
        %1556 = vmatpush1.bf16.msra.mxu0 %v1541
        %1557 = vmatprep.subr.bf16.mxu0 0
        %1558 = vmatpush1.bf16.msra.mxu0 %v1542
        %1559 = vmatprep.subr.bf16.mxu0 0
        %1560 = vmatpush1.bf16.msra.mxu0 0
        %1561 = vmatprep.subr.bf16.mxu0 0
        %1562 = vmatpush1.bf16.msra.mxu0 0
        %1563 = vmatprep.subr.bf16.mxu0 0
        %1564 = vmatpush1.bf16.msra.mxu0 0
        %1565 = vmatprep.subr.bf16.mxu0 0
        %1566 = vmatpush1.bf16.msra.mxu0 0
        %1567 = vmatprep.subr.bf16.mxu0 0
        %1568 = vmatpush1.bf16.msra.mxu0 0
        %1569 = vmatprep.subr.bf16.mxu0 0
        %1570 = vmatpush1.bf16.msra.mxu0 0
        %1571 = vmatprep.subr.bf16.mxu0 0
        %1572 = vmatpush1.bf16.msra.mxu0 0
        %1573 = vmatprep.subr.bf16.mxu0 0
        %1574 = vmatpush1.bf16.msra.mxu0 0
        %1575 = vmatprep.subr.bf16.mxu0 0
        %1576 = vmatpush1.bf16.msra.mxu0 0
        %1577 = vmatprep.subr.bf16.mxu0 0
        %1578 = vmatpush1.bf16.msra.mxu0 0
        %1579 = vmatprep.subr.bf16.mxu0 0
        %1580 = vmatpush1.bf16.msra.mxu0 0
        %1581 = vmatprep.subr.bf16.mxu0 0
        %1582 = vmatpush1.bf16.msra.mxu0 0
        %1583 = vmatprep.mubr.bf16.mxu0 0
        %1584 = vmatmul.mubr.bf16.gmra.mrb[0].mxu0 %v1549
        %v1585 = vpop.f32.mrb[0].mxu0
        %v1586 = vadd.f32 %v1522, %v1585
        %v1587 = vpop.f32.mrb[0].mxu0
        %v1588 = vpop.f32.mrb[0].mxu0
        %v1589 = vadd.f32 %v1522, %v1588
        %v1590 = vpop.f32.mrb[0].mxu0
        %1591 = vdwg.mxu0
        %v1592 = vadd.f32 %v1413, %v1586
        %v1593 = vadd.f32 %v1414, %v1589
        %1594 = vst.msk [vmem:[#allocation2] sm:$0xff] %vm570, %v1592
        %1595 = vst.msk [vmem:[#allocation2 + $0x8] sm:$0xff] %vm570, %v1593
        %p1596 = scmp.eq.s32.totalorder %s29, 1
        // Predicated region
        $region65: #{hire_mlp_forward.1} parent=59 // pred_check
          %p1597 = pneg %p1596
        $region66: #{hire_mlp_forward.1} parent=59 // pred_check_branch
          %1599 = sbr.rel (%p1597) target = $region68
        $region67: #{hire_mlp_forward.1} parent=59 // pred_region
          %v1600 = vsel %vm570, %v1592, 0.0
          %v1601 = vsel %vm570, %v1593, 0.0
          %v1602 = vadd.f32 %v1600, %v1601
          %v1603 = vrot.slane %v1602, 4
          %v1604 = vadd.f32 %v1602, %v1603
          %v1605 = vrot.slane %v1604, 2
          %v1606 = vadd.f32 %v1604, %v1605
          %v1607 = vrot.slane %v1606, 1
          %v1608 = vadd.f32 %v1606, %v1607
          %v1609 = vrcp.pop 16.0
          %v1610 = vmul.f32 %v1608, %v1609
          %v1611 = vld [vmem:[%s8] sm:$0xf]
          %v1612 = vld [vmem:[%s8 + $0x4] sm:$0xf]
          %v1613 = vld [vmem:[%s8 + $0x8] sm:$0xf]
          %v1614 = vld [vmem:[%s8 + $0xc] sm:$0xf]
          %v1615 = vpack.c.bf16 %v1610, %v1610
          %v1616 = vld [vmem:[%s9] sm:$0x1]
          %v1621 = vunpack.c.l.b16 %v1611
          %v1622 = vunpack.c.l.b16 %v1612
          %v1623 = vunpack.c.l.b16 %v1613
          %v1624 = vunpack.c.l.b16 %v1614
          %v1625 = vpack.c.b16 %v1622, %v1621
          %v1626 = vpack.c.b16 %v1624, %v1623
          %v1630 = vsel %vm570, %v1615, 0
          %1632 = vmatprep.subr.bf16.mxu0 0
          %1633 = vmatpush1.bf16.msra.mxu0 %v1625
          %1634 = vmatprep.subr.bf16.mxu0 0
          %1635 = vmatpush1.bf16.msra.mxu0 %v1626
          %1636 = vmatprep.subr.bf16.mxu0 0
          %1637 = vmatpush1.bf16.msra.mxu0 0
          %1638 = vmatprep.subr.bf16.mxu0 0
          %1639 = vmatpush1.bf16.msra.mxu0 0
          %1640 = vmatprep.subr.bf16.mxu0 0
          %1641 = vmatpush1.bf16.msra.mxu0 0
          %1642 = vmatprep.subr.bf16.mxu0 0
          %1643 = vmatpush1.bf16.msra.mxu0 0
          %1644 = vmatprep.subr.bf16.mxu0 0
          %1645 = vmatpush1.bf16.msra.mxu0 0
          %1646 = vmatprep.subr.bf16.mxu0 0
          %1647 = vmatpush1.bf16.msra.mxu0 0
          %1648 = vmatprep.subr.bf16.mxu0 0
          %1649 = vmatpush1.bf16.msra.mxu0 0
          %1650 = vmatprep.subr.bf16.mxu0 0
          %1651 = vmatpush1.bf16.msra.mxu0 0
          %1652 = vmatprep.subr.bf16.mxu0 0
          %1653 = vmatpush1.bf16.msra.mxu0 0
          %1654 = vmatprep.subr.bf16.mxu0 0
          %1655 = vmatpush1.bf16.msra.mxu0 0
          %1656 = vmatprep.subr.bf16.mxu0 0
          %1657 = vmatpush1.bf16.msra.mxu0 0
          %1658 = vmatprep.subr.bf16.mxu0 0
          %1659 = vmatpush1.bf16.msra.mxu0 0
          %1660 = vmatprep.subr.bf16.mxu0 0
          %1661 = vmatpush1.bf16.msra.mxu0 0
          %1662 = vmatprep.subr.bf16.mxu0 0
          %1663 = vmatpush1.bf16.msra.mxu0 0
          %1664 = vmatprep.mubr.bf16.mxu0 0
          %1665 = vmatmul.mubr.bf16.gmra.mrb[0].mxu0 %v1630
          %v1666 = vpop.f32.mrb[0].mxu0
          %v1667 = vadd.f32 %v1616, %v1666
          %v1668 = vpop.f32.mrb[0].mxu0
          %v1669 = vpop.f32.mrb[0].mxu0
          %v1670 = vpop.f32.mrb[0].mxu0
          %1671 = vdwg.mxu0
          %vm1672 = vcmask 73728
          %1673 = vst.msk [vmem:[%s439] sm:$0x1] %vm1672, %v1667
        $region68: #{hire_mlp_forward.1} parent=59 // pred_fallthru
          _
        %s1674 = sand.u32 %s284, 1
        %s1675 = scalar_lea.sflag [#allocation4], %s1674
        %s1676 = sand.u32 %s284, 1
        %s1677 = scalar_lea.vmem [#allocation3], %s1676
        // Predicated region
        $region69: #{hire_mlp_forward.1} parent=59 // pred_check
          %p1678 = pneg %p294
        $region70: #{hire_mlp_forward.1} parent=59 // pred_check_branch
          %1680 = sbr.rel (%p1678) target = $region72
        $region71: #{hire_mlp_forward.1} parent=59 // pred_region
          %s1682 = ssub.s32 16, 16
          %1683 = vsyncadd %s1675, %s1682
          %s1684 = smul.addr %s28, 16
          %s1685 = scalar_lea.hbm %s10, %s1684
          %s1687 = sshll.u32 %s1677, 4
          %s1688 = int_to_ptr.vmem [resolvable:$true] %s1687
          %1690 = dma.vmem_to_hbm [thread:$0]  %s1688, 16, %s1685, %s1675
        $region72: #{hire_mlp_forward.1} parent=59 // pred_fallthru
          _
      $region60: #{hire_mlp_forward.1} parent=5 // pred_fallthru
        _
      %p1691 = scmp.le.s32.totalorder 2, %s19
      // Predicated region
      $region73: #{hire_mlp_forward.1} parent=5 // pred_check
        %p1692 = pneg %p1691
      $region74: #{hire_mlp_forward.1} parent=5 // pred_check_branch
        %1694 = sbr.rel (%p1692) target = $region76
      $region75: #{hire_mlp_forward.1} parent=5 // pred_region
        %s1695 = ssub.s32 %s19, 2
        // Predicated region
        $region77: #{hire_mlp_forward.1} parent=75 // pred_check
          %p1696 = pneg %p300
        $region78: #{hire_mlp_forward.1} parent=75 // pred_check_branch
          %1698 = sbr.rel (%p1696) target = $region80
        $region79: #{hire_mlp_forward.1} parent=75 // pred_region
          %s1699 = sand.u32 %s285, 1
          %s1700 = scalar_lea.sflag [#allocation4], %s1699
          %s1701 = sand.u32 %s285, 1
          %s1702 = scalar_lea.vmem [#allocation3], %s1701
          %1703 = dma.done %s1700, 16
        $region80: #{hire_mlp_forward.1} parent=75 // pred_fallthru
          _
      $region76: #{hire_mlp_forward.1} parent=5 // pred_fallthru
        _
    $region6: #{hire_mlp_forward.1} parent=1 // loop_footer
      %s23 = sadd.s32 1, %s19
    $region7: #{hire_mlp_forward.1} parent=1 // loop_footer_branch
      %18 = sbr.rel target = $region3
    $region8: #{hire_mlp_forward.1} parent=1 // loop_exit
      _
    %1704 = vsyncpa [#allocation4], 1
    %s1705 = scalar_lea.sflag [#allocation4], 1
    %1706 = vsyncpa %s1705, 1

</llo_original>
